<compile_context>
chip_gen: v5e
topology: v5e:2x2
jax: 0.10.0
libtpu: 0.0.40
codegen_flags: <defaults>
</compile_context>

<pallas_src>
import functools

import jax
import jax.numpy as jnp
from jax.experimental import pallas as pl
from jax.experimental.pallas import tpu as pltpu


# --------------------------------------------------------------------------
# Pallas kernel 1: tap-accumulation conv + BN shift + act (+ fused residual)
# --------------------------------------------------------------------------
def _conv_tap_kernel(*refs, k, dil, tr, ow, cin, cout, act, has_add, post_act):
    if has_add:
        x_ref, w_ref, sh_ref, add_ref, o_ref = refs
    else:
        x_ref, w_ref, sh_ref, o_ref = refs
        add_ref = None
    r = pl.program_id(1)
    row_base = pl.multiple_of(r * tr, tr)

    acc = jnp.zeros((tr * ow, cout), jnp.float32)
    for t in range(k * k):                       # static unroll over taps
        ki, kj = divmod(t, k)
        xt = x_ref[0, pl.ds(row_base + ki * dil, tr), pl.ds(kj * dil, ow), :]
        acc = acc + jnp.dot(xt.reshape(tr * ow, cin), w_ref[t],
                            preferred_element_type=jnp.float32)

    y = acc + sh_ref[...]                        # (1, cout): BN shift / bias
    if act == "relu":
        y = jnp.maximum(y, 0.0)
    elif act == "sigmoid":
        y = jax.nn.sigmoid(y)
    if has_add:                                  # fused residual add (+ relu)
        y = y + add_ref[0].reshape(tr * ow, cout).astype(jnp.float32)
        if post_act == "relu":
            y = jnp.maximum(y, 0.0)
    o_ref[0] = y.reshape(tr, ow, cout).astype(o_ref.dtype)


def _pick_row_tile(oh, ow, target=2048):
    """Largest divisor of oh with tr*ow <= target rows of M per grid step."""
    best = 1
    for tr in range(1, oh + 1):
        if oh % tr == 0 and tr * ow <= target:
            best = tr
    return best


def conv_tap(x, w, shift, *, k, dil=1, act="none", add=None, post_act="none"):
    """Direct conv of already-padded NHWC `x` (bf16) via shifted-tap matmuls.

    x:     (N, Hp, Wp, Cin)  bf16, spatially padded for the conv.
    w:     (k*k, Cin, Cout)  bf16, BN scale folded in.
    shift: (1, Cout)         f32.
    add:   optional residual of output shape, added after `act`, then post_act.
    """
    N, Hp, Wp, cin = x.shape
    taps, cin_w, cout = w.shape
    assert taps == k * k and cin_w == cin
    oh = Hp - (k - 1) * dil
    ow = Wp - (k - 1) * dil
    tr = _pick_row_tile(oh, ow)

    in_specs = [
        pl.BlockSpec((1, Hp, Wp, cin), lambda n, r: (n, 0, 0, 0)),   # resident
        pl.BlockSpec((taps, cin, cout), lambda n, r: (0, 0, 0)),
        pl.BlockSpec((1, cout), lambda n, r: (0, 0)),
    ]
    args = [x, w, shift]
    if add is not None:
        in_specs.append(pl.BlockSpec((1, tr, ow, cout), lambda n, r: (n, r, 0, 0)))
        args.append(add)

    return pl.pallas_call(
        functools.partial(_conv_tap_kernel, k=k, dil=dil, tr=tr, ow=ow,
                          cin=cin, cout=cout, act=act,
                          has_add=add is not None, post_act=post_act),
        out_shape=jax.ShapeDtypeStruct((N, oh, ow, cout), jnp.bfloat16),
        grid_spec=pltpu.PrefetchScalarGridSpec(
            num_scalar_prefetch=0,
            grid=(N, oh // tr),
            in_specs=in_specs,
            out_specs=pl.BlockSpec((1, tr, ow, cout), lambda n, r: (n, r, 0, 0)),
        ),
        compiler_params=pltpu.CompilerParams(
            dimension_semantics=("parallel", "parallel"),
            vmem_limit_bytes=48 << 20,          # fits v7x's 64 MiB VMEM
        ),
    )(*args)


# --------------------------------------------------------------------------
# Pallas kernel 2: position attention (DANet PAM), channels-last per batch
# --------------------------------------------------------------------------
def _pam_kernel(q_ref, k_ref, v_ref, x_ref, o_ref, *, alpha):
    q = q_ref[0]                                             # (hw, c8) bf16
    kk = k_ref[0]                                            # (hw, c8) bf16
    energy = jnp.einsum("qc,kc->qk", q, kk,
                        preferred_element_type=jnp.float32)  # (hw, hw) f32
    m = jnp.max(energy, axis=-1, keepdims=True)
    p = jnp.exp(energy - m)
    l = jnp.sum(p, axis=-1, keepdims=True)
    out = jnp.dot(p.astype(jnp.bfloat16), v_ref[0],
                  preferred_element_type=jnp.float32)        # (hw, C)
    out = out * pl.reciprocal(l, approx=True)                # fold softmax denom
    y = alpha * out + x_ref[0].astype(jnp.float32)           # fused residual
    o_ref[0] = y.astype(o_ref.dtype)


def pam_attention(q, k, v, x, alpha):
    """q,k: (N,hw,c8)  v,x: (N,hw,C)  ->  (N,hw,C); everything channels-last."""
    N, hw, c8 = q.shape
    C = v.shape[-1]
    idx = lambda n: (n, 0, 0)
    return pl.pallas_call(
        functools.partial(_pam_kernel, alpha=alpha),
        out_shape=jax.ShapeDtypeStruct((N, hw, C), jnp.bfloat16),
        grid_spec=pltpu.PrefetchScalarGridSpec(
            num_scalar_prefetch=0,
            grid=(N,),
            in_specs=[
                pl.BlockSpec((1, hw, c8), idx),
                pl.BlockSpec((1, hw, c8), idx),
                pl.BlockSpec((1, hw, C), idx),
                pl.BlockSpec((1, hw, C), idx),
            ],
            out_specs=pl.BlockSpec((1, hw, C), idx),
        ),
        compiler_params=pltpu.CompilerParams(
            dimension_semantics=("parallel",)),
    )(q, k, v, x)


# --------------------------------------------------------------------------
# Pallas kernel 3: fused 1x1 gate conv + sigmoid gated mix (CDFSF)
# --------------------------------------------------------------------------
def _gate_fuse_kernel(a_ref, b_ref, w_ref, bias_ref, o_ref, *, tr, ow, c):
    a = a_ref[0].reshape(tr * ow, c)
    b = b_ref[0].reshape(tr * ow, c)
    g = jnp.dot(a + b, w_ref[...],
                preferred_element_type=jnp.float32) + bias_ref[...]
    wgt = jax.nn.sigmoid(g)
    y = wgt * a.astype(jnp.float32) + (1.0 - wgt) * b.astype(jnp.float32)
    o_ref[0] = y.reshape(tr, ow, c).astype(o_ref.dtype)


def gate_fuse(a, b, w, bias):
    """y = sigmoid((a+b) @ w + bias) * a + (1 - sigmoid(.)) * b   (NHWC)."""
    N, H, W, C = a.shape
    tr = _pick_row_tile(H, W)
    blk = pl.BlockSpec((1, tr, W, C), lambda n, r: (n, r, 0, 0))
    return pl.pallas_call(
        functools.partial(_gate_fuse_kernel, tr=tr, ow=W, c=C),
        out_shape=jax.ShapeDtypeStruct((N, H, W, C), jnp.bfloat16),
        grid_spec=pltpu.PrefetchScalarGridSpec(
            num_scalar_prefetch=0,
            grid=(N, H // tr),
            in_specs=[blk, blk,
                      pl.BlockSpec((C, C), lambda n, r: (0, 0)),
                      pl.BlockSpec((1, C), lambda n, r: (0, 0))],
            out_specs=blk),
        compiler_params=pltpu.CompilerParams(
            dimension_semantics=("parallel", "parallel"),
            vmem_limit_bytes=48 << 20),
    )(a, b, w, bias)


# --------------------------------------------------------------------------
# Conv + BN + activation wrapper (weights bf16, BN scale folded in)
# --------------------------------------------------------------------------
class ConvBnAct:
    def __init__(self, key, cin, cout, k, stride=1, pad=0, dilation=1,
                 act="relu", use_bn=True, bias=False):
        assert stride in (1, 2)
        wkey, bkey = jax.random.split(key)
        fan_in = cin * k * k
        w = jax.random.normal(wkey, (k, k, cin, cout), jnp.float32)
        w = w * (2.0 / fan_in) ** 0.5                       # HWIO
        eps = 1e-5
        if use_bn:                                          # eval-mode BN stats
            gamma = jnp.ones((cout,), jnp.float32)
            beta = jnp.zeros((cout,), jnp.float32)
            mean = jnp.zeros((cout,), jnp.float32)
            var = jnp.ones((cout,), jnp.float32)
            scale = gamma / jnp.sqrt(var + eps)
            shift = beta - mean * scale
        else:
            scale = jnp.ones((cout,), jnp.float32)
            shift = (jax.random.normal(bkey, (cout,), jnp.float32) * 0.01
                     if bias else jnp.zeros((cout,), jnp.float32))
        w = w * scale[None, None, None, :]                  # fold BN scale
        self.shift = shift.reshape(1, cout)
        self.stride, self.pad, self.dilation, self.act = stride, pad, dilation, act

        if stride == 2:
            # Remap to a stride-1 conv over a space-to-depth input:
            # tap (ki,kj) -> offset (ki//2, kj//2), phase (ki%2, kj%2).
            assert dilation == 1
            k2 = (k + 1) // 2
            w2 = jnp.zeros((k2, k2, 2, 2, cin, cout), jnp.float32)
            for ki in range(k):
                for kj in range(k):
                    w2 = w2.at[ki // 2, kj // 2, ki % 2, kj % 2].set(w[ki, kj])
            self.k_eff = k2
            self.wm = w2.reshape(k2 * k2, 4 * cin, cout).astype(jnp.bfloat16)
        else:
            self.k_eff = k
            self.wm = w.reshape(k * k, cin, cout).astype(jnp.bfloat16)

    def __call__(self, x, add=None, post_act="none"):       # x: NHWC bf16
        p = self.pad
        if p:
            x = jnp.pad(x, ((0, 0), (p, p), (p, p), (0, 0)))
        if self.stride == 2:
            N, Hp, Wp, C = x.shape
            assert Hp % 2 == 0 and Wp % 2 == 0
            # space-to-depth: stride-2 conv -> stride-1 conv on (Hp/2, Wp/2, 4C)
            x = (x.reshape(N, Hp // 2, 2, Wp // 2, 2, C)
                   .transpose(0, 1, 3, 2, 4, 5)
                   .reshape(N, Hp // 2, Wp // 2, 4 * C))
        return conv_tap(x, self.wm, self.shift, k=self.k_eff,
                        dil=self.dilation, act=self.act, add=add,
                        post_act=post_act)


# --------------------------------------------------------------------------
# Sub-modules (reconstructed; see TODO(synk) at the top of the file)
# --------------------------------------------------------------------------
class BMF:
    """Bi-temporal fusion: concat + abs-diff branches, stride 2.  The final
    residual add + ReLU is fused into the diff-branch conv epilogue."""

    def __init__(self, key, in_c=3):
        k1, k2 = jax.random.split(key)
        self.fuse = ConvBnAct(k1, 2 * in_c, 64, 3, 2, 1, act="relu")
        self.diff = ConvBnAct(k2, in_c, 64, 3, 2, 1, act="relu")

    def __call__(self, x1, x2):
        a = self.fuse(jnp.concatenate([x1, x2], axis=-1))
        return self.diff(jnp.abs(x1 - x2), add=a, post_act="relu")


class MRFEStage:
    def __init__(self, key, cin, cout):
        k1, k2, k3 = jax.random.split(key, 3)
        self.down = ConvBnAct(k1, cin, cout, 3, 2, 1, act="relu")
        self.b1 = ConvBnAct(k2, cout, cout, 3, 1, 1, dilation=1, act="relu")
        self.b2 = ConvBnAct(k3, cout, cout, 3, 1, 2, dilation=2, act="relu")

    def __call__(self, x):
        y = self.down(x)
        z = self.b1(y, add=y)                        # relu(conv1) + y
        return self.b2(y, add=z, post_act="relu")    # relu(relu(conv2) + z)


class MRFE:
    """Multi-receptive-field encoder producing (f2, f3, f4)."""

    def __init__(self, key):
        k1, k2, k3 = jax.random.split(key, 3)
        self.s2 = MRFEStage(k1, 64, 128)
        self.s3 = MRFEStage(k2, 128, 256)
        self.s4 = MRFEStage(k3, 256, 512)

    def __call__(self, f1):
        f2 = self.s2(f1)
        f3 = self.s3(f2)
        f4 = self.s4(f3)
        return f2, f3, f4


class PositionAttentionModule:
    """DANet-style position attention, channels-last throughout."""

    def __init__(self, key, c):
        k1, k2, k3 = jax.random.split(key, 3)
        self.conv_b = ConvBnAct(k1, c, c // 8, 1, act="none", use_bn=False, bias=True)
        self.conv_c = ConvBnAct(k2, c, c // 8, 1, act="none", use_bn=False, bias=True)
        self.conv_d = ConvBnAct(k3, c, c, 1, act="none", use_bn=False, bias=True)
        self.alpha = 0.0                              # DANet gamma, init 0

    def __call__(self, x):                            # x: NHWC bf16
        N, H, W, C = x.shape
        hw = H * W
        q = self.conv_b(x).reshape(N, hw, C // 8)
        k = self.conv_c(x).reshape(N, hw, C // 8)
        v = self.conv_d(x).reshape(N, hw, C)
        out = pam_attention(q, k, v, x.reshape(N, hw, C), self.alpha)
        return out.reshape(N, H, W, C)


class CDFSF:
    """Cross-level gated fusion; gate conv + sigmoid mix fused into one kernel."""

    def __init__(self, key, cin, cout):
        k1, k2, k3, k4 = jax.random.split(key, 4)
        self.conv_low = ConvBnAct(k1, cin, cout, 3, 1, 1, act="relu")
        self.conv_skip = ConvBnAct(k2, cout, cout, 3, 1, 1, act="relu")
        self.w_gate = (jax.random.normal(k3, (cout, cout), jnp.float32)
                       * (2.0 / cout) ** 0.5).astype(jnp.bfloat16)
        self.b_gate = jnp.zeros((1, cout), jnp.float32)
        self.conv_out = ConvBnAct(k4, cout, cout, 3, 1, 1, act="relu")

    def __call__(self, x, skip):
        _, Hs, Ws, _ = skip.shape
        if x.shape[1] != Hs or x.shape[2] != Ws:
            # TODO(synk): bilinear resize kept as XLA glue (jax.image.resize).
            x = jax.image.resize(x.astype(jnp.float32),
                                 (x.shape[0], Hs, Ws, x.shape[3]),
                                 "bilinear").astype(jnp.bfloat16)
        a = self.conv_low(x)
        b = self.conv_skip(skip)
        fused = gate_fuse(a, b, self.w_gate, self.b_gate)
        return self.conv_out(fused)


class MSFGNet:
    def __init__(self, key, in_channels=6, num_classes=2):
        ks = jax.random.split(key, 8)
        self.bmf = BMF(ks[0], in_channels // 2)
        self.encode = MRFE(ks[1])
        self.pam = PositionAttentionModule(ks[2], 512)
        self.up1 = CDFSF(ks[3], 512, 512)
        self.up2 = CDFSF(ks[4], 512, 256)
        self.up3 = CDFSF(ks[5], 256, 128)
        self.up4 = CDFSF(ks[6], 128, 64)
        # classifier: ConvBn(64, num_classes, 7, 1, 3) + Sigmoid (fused act)
        self.classifier = ConvBnAct(ks[7], 64, num_classes, 7, 1, 3, act="sigmoid")

    def __call__(self, x1_nchw, x2_nchw):
        x1 = jnp.transpose(x1_nchw, (0, 2, 3, 1)).astype(jnp.bfloat16)
        x2 = jnp.transpose(x2_nchw, (0, 2, 3, 1)).astype(jnp.bfloat16)
        f1 = self.bmf(x1, x2)
        f2, f3, f4 = self.encode(f1)
        f5 = self.pam(f4)
        y = self.up1(f5, f4)
        y = self.up2(y, f3)
        y = self.up3(y, f2)
        y = self.up4(y, f1)
        N, H, W, C = y.shape
        # TODO(synk): final 2x bilinear upsample kept as XLA glue.
        y = jax.image.resize(y.astype(jnp.float32), (N, 2 * H, 2 * W, C),
                             "bilinear").astype(jnp.bfloat16)
        y = self.classifier(y)
        return jnp.transpose(y, (0, 3, 1, 2)).astype(jnp.float32)   # NCHW


if __name__ == "__main__":
    key = jax.random.PRNGKey(0)
    kparam, kx1, kx2 = jax.random.split(key, 3)
    model = MSFGNet(kparam, in_channels=6, num_classes=2)
    # two 3-channel images (in_channels=6 => bi-temporal pair), small spatial
    x1 = jax.random.normal(kx1, (2, 3, 32, 32), jnp.float32)
    x2 = jax.random.normal(kx2, (2, 3, 32, 32), jnp.float32)
    out = model(x1, x2)
    out = jax.block_until_ready(out)
    assert out.shape == (2, 2, 32, 32), out.shape
    assert bool(jnp.all(jnp.isfinite(out)))
    print("KERNEL_OK")
</pallas_src>

<mosaic_0001>
module attributes {stable_mosaic.version = 11 : i64} {
  func.func @_conv_tap_kernel(%arg0: i32, %arg1: i32, %arg2: memref<1x17x17x24xbf16, #tpu.memory_space<vmem>>, %arg3: memref<4x24x64xbf16, #tpu.memory_space<vmem>>, %arg4: memref<1x64xf32, #tpu.memory_space<vmem>>, %arg5: memref<1x16x16x64xbf16, #tpu.memory_space<vmem>>) attributes {dimension_semantics = [#tpu.dimension_semantics<parallel>, #tpu.dimension_semantics<parallel>], iteration_bounds = array<i64: 2, 1>, scalar_prefetch = 0 : i64, scratch_operands = 0 : i64, tpu.core_type = #tpu.core_type<tc>, window_params = [{transform_indices = @transform_0, window_bounds = array<i64: 1, 17, 17, 24>}, {pipeline_mode = #tpu.pipeline_mode<synchronous>, transform_indices = @transform_1, window_bounds = array<i64: 4, 24, 64>}, {pipeline_mode = #tpu.pipeline_mode<synchronous>, transform_indices = @transform_2, window_bounds = array<i64: 1, 64>}, {transform_indices = @transform_3, window_bounds = array<i64: 1, 16, 16, 64>}]} {
    %c16_i32 = arith.constant 16 : i32
    %0 = arith.muli %arg1, %c16_i32 : i32
    %1 = tpu.assume_multiple %0, 16 : i32
    %cst = arith.constant 0.000000e+00 : f32
    %2 = vector.broadcast %cst : f32 to vector<256x64xf32>
    %c0_i32 = arith.constant 0 : i32
    %3 = arith.addi %1, %c0_i32 : i32
    %c0 = arith.constant 0 : index
    %4 = arith.index_cast %3 : i32 to index
    %c0_0 = arith.constant 0 : index
    %c0_1 = arith.constant 0 : index
    %5 = vector.load %arg2[%c0, %4, %c0_0, %c0_1] : memref<1x17x17x24xbf16, #tpu.memory_space<vmem>>, vector<1x16x16x24xbf16>
    %6 = vector.shape_cast %5 : vector<1x16x16x24xbf16> to vector<16x16x24xbf16>
    %7 = vector.shape_cast %6 : vector<16x16x24xbf16> to vector<256x24xbf16>
    %c0_2 = arith.constant 0 : index
    %c0_3 = arith.constant 0 : index
    %c0_4 = arith.constant 0 : index
    %8 = vector.load %arg3[%c0_2, %c0_3, %c0_4] : memref<4x24x64xbf16, #tpu.memory_space<vmem>>, vector<1x24x64xbf16>
    %9 = vector.shape_cast %8 : vector<1x24x64xbf16> to vector<24x64xbf16>
    %cst_5 = arith.constant dense<0.000000e+00> : vector<256x64xf32>
    %10 = tpu.matmul %7, %9, %cst_5 {dimension_numbers = #tpu.dot_dimension_numbers<[1], [0], [0], [1], [0, 0, 1, 1], [], []>} : vector<256x24xbf16>, vector<24x64xbf16>, vector<256x64xf32> -> vector<256x64xf32>
    %11 = arith.addf %2, %10 : vector<256x64xf32>
    %c0_i32_6 = arith.constant 0 : i32
    %12 = arith.addi %1, %c0_i32_6 : i32
    %c0_7 = arith.constant 0 : index
    %13 = arith.index_cast %12 : i32 to index
    %c1 = arith.constant 1 : index
    %c0_8 = arith.constant 0 : index
    %14 = vector.load %arg2[%c0_7, %13, %c1, %c0_8] : memref<1x17x17x24xbf16, #tpu.memory_space<vmem>>, vector<1x16x16x24xbf16>
    %15 = vector.shape_cast %14 : vector<1x16x16x24xbf16> to vector<16x16x24xbf16>
    %16 = vector.shape_cast %15 : vector<16x16x24xbf16> to vector<256x24xbf16>
    %c1_9 = arith.constant 1 : index
    %c0_10 = arith.constant 0 : index
    %c0_11 = arith.constant 0 : index
    %17 = vector.load %arg3[%c1_9, %c0_10, %c0_11] : memref<4x24x64xbf16, #tpu.memory_space<vmem>>, vector<1x24x64xbf16>
    %18 = vector.shape_cast %17 : vector<1x24x64xbf16> to vector<24x64xbf16>
    %cst_12 = arith.constant dense<0.000000e+00> : vector<256x64xf32>
    %19 = tpu.matmul %16, %18, %cst_12 {dimension_numbers = #tpu.dot_dimension_numbers<[1], [0], [0], [1], [0, 0, 1, 1], [], []>} : vector<256x24xbf16>, vector<24x64xbf16>, vector<256x64xf32> -> vector<256x64xf32>
    %20 = arith.addf %11, %19 : vector<256x64xf32>
    %c1_i32 = arith.constant 1 : i32
    %21 = arith.addi %1, %c1_i32 : i32
    %c0_13 = arith.constant 0 : index
    %22 = arith.index_cast %21 : i32 to index
    %c0_14 = arith.constant 0 : index
    %c0_15 = arith.constant 0 : index
    %23 = vector.load %arg2[%c0_13, %22, %c0_14, %c0_15] : memref<1x17x17x24xbf16, #tpu.memory_space<vmem>>, vector<1x16x16x24xbf16>
    %24 = vector.shape_cast %23 : vector<1x16x16x24xbf16> to vector<16x16x24xbf16>
    %25 = vector.shape_cast %24 : vector<16x16x24xbf16> to vector<256x24xbf16>
    %c2 = arith.constant 2 : index
    %c0_16 = arith.constant 0 : index
    %c0_17 = arith.constant 0 : index
    %26 = vector.load %arg3[%c2, %c0_16, %c0_17] : memref<4x24x64xbf16, #tpu.memory_space<vmem>>, vector<1x24x64xbf16>
    %27 = vector.shape_cast %26 : vector<1x24x64xbf16> to vector<24x64xbf16>
    %cst_18 = arith.constant dense<0.000000e+00> : vector<256x64xf32>
    %28 = tpu.matmul %25, %27, %cst_18 {dimension_numbers = #tpu.dot_dimension_numbers<[1], [0], [0], [1], [0, 0, 1, 1], [], []>} : vector<256x24xbf16>, vector<24x64xbf16>, vector<256x64xf32> -> vector<256x64xf32>
    %29 = arith.addf %20, %28 : vector<256x64xf32>
    %c1_i32_19 = arith.constant 1 : i32
    %30 = arith.addi %1, %c1_i32_19 : i32
    %c0_20 = arith.constant 0 : index
    %31 = arith.index_cast %30 : i32 to index
    %c1_21 = arith.constant 1 : index
    %c0_22 = arith.constant 0 : index
    %32 = vector.load %arg2[%c0_20, %31, %c1_21, %c0_22] : memref<1x17x17x24xbf16, #tpu.memory_space<vmem>>, vector<1x16x16x24xbf16>
    %33 = vector.shape_cast %32 : vector<1x16x16x24xbf16> to vector<16x16x24xbf16>
    %34 = vector.shape_cast %33 : vector<16x16x24xbf16> to vector<256x24xbf16>
    %c3 = arith.constant 3 : index
    %c0_23 = arith.constant 0 : index
    %c0_24 = arith.constant 0 : index
    %35 = vector.load %arg3[%c3, %c0_23, %c0_24] : memref<4x24x64xbf16, #tpu.memory_space<vmem>>, vector<1x24x64xbf16>
    %36 = vector.shape_cast %35 : vector<1x24x64xbf16> to vector<24x64xbf16>
    %cst_25 = arith.constant dense<0.000000e+00> : vector<256x64xf32>
    %37 = tpu.matmul %34, %36, %cst_25 {dimension_numbers = #tpu.dot_dimension_numbers<[1], [0], [0], [1], [0, 0, 1, 1], [], []>} : vector<256x24xbf16>, vector<24x64xbf16>, vector<256x64xf32> -> vector<256x64xf32>
    %38 = arith.addf %29, %37 : vector<256x64xf32>
    %c0_26 = arith.constant 0 : index
    %c0_27 = arith.constant 0 : index
    %39 = vector.load %arg4[%c0_26, %c0_27] : memref<1x64xf32, #tpu.memory_space<vmem>>, vector<1x64xf32>
    %40 = vector.broadcast %39 : vector<1x64xf32> to vector<256x64xf32>
    %41 = arith.addf %38, %40 : vector<256x64xf32>
    %cst_28 = arith.constant 0.000000e+00 : f32
    %42 = vector.broadcast %cst_28 : f32 to vector<256x64xf32>
    %43 = arith.maximumf %41, %42 : vector<256x64xf32>
    %44 = vector.shape_cast %43 : vector<256x64xf32> to vector<16x16x64xf32>
    %45 = arith.truncf %44 : vector<16x16x64xf32> to vector<16x16x64xbf16>
    %c0_29 = arith.constant 0 : index
    %c0_30 = arith.constant 0 : index
    %c0_31 = arith.constant 0 : index
    %c0_32 = arith.constant 0 : index
    %46 = vector.load %arg5[%c0_29, %c0_30, %c0_31, %c0_32] : memref<1x16x16x64xbf16, #tpu.memory_space<vmem>>, vector<1x16x16x64xbf16>
    %47 = vector.shape_cast %46 : vector<1x16x16x64xbf16> to vector<16x16x64xbf16>
    %48 = vector.shape_cast %45 : vector<16x16x64xbf16> to vector<1x16x16x64xbf16>
    tpu.vector_store %arg5[%c0_29, %c0_30, %c0_31, %c0_32], %48 {strides = array<i32>} : memref<1x16x16x64xbf16, #tpu.memory_space<vmem>>, vector<1x16x16x64xbf16>,
    return
  }
  func.func @transform_0(%arg0: i32, %arg1: i32) -> (i32, i32, i32, i32) {
    %c0_i32 = arith.constant 0 : i32
    %c0_i32_0 = arith.constant 0 : i32
    %c0_i32_1 = arith.constant 0 : i32
    %c0_i32_2 = arith.constant 0 : i32
    return %arg0, %c0_i32, %c0_i32_0, %c0_i32_1 : i32, i32, i32, i32
  }
  func.func @transform_1(%arg0: i32, %arg1: i32) -> (i32, i32, i32) {
    %c0_i32 = arith.constant 0 : i32
    %c0_i32_0 = arith.constant 0 : i32
    %c0_i32_1 = arith.constant 0 : i32
    %c0_i32_2 = arith.constant 0 : i32
    return %c0_i32, %c0_i32_0, %c0_i32_1 : i32, i32, i32
  }
  func.func @transform_2(%arg0: i32, %arg1: i32) -> (i32, i32) {
    %c0_i32 = arith.constant 0 : i32
    %c0_i32_0 = arith.constant 0 : i32
    %c0_i32_1 = arith.constant 0 : i32
    return %c0_i32, %c0_i32_0 : i32, i32
  }
  func.func @transform_3(%arg0: i32, %arg1: i32) -> (i32, i32, i32, i32) {
    %c0_i32 = arith.constant 0 : i32
    %c0_i32_0 = arith.constant 0 : i32
    %c0_i32_1 = arith.constant 0 : i32
    return %arg0, %arg1, %c0_i32, %c0_i32_0 : i32, i32, i32, i32
  }
}

</mosaic_0001>

<llo_original>
// kernel: tpu_custom_call.1
$region0: #{tpu_custom_call.1}
  #allocation0 [shape = 'u32[]', space=smem, size = 0x4, offset = 0x4, fixed_abs, tag = 'smem constant byte address 0x4 - core index']
  #allocation1 [shape = 'u32[72,128]{1,0:T(1,128)}', space=vmem, size = 0x9000, scoped, tag = 'internal scratch']
  %s0 = inlined_call_operand.vmem [shape: bf16[2,17,17,24], index: 0, kind: input, shape index: {}]
  %s1 = inlined_call_operand.vmem [shape: bf16[4,24,64], index: 1, kind: input, shape index: {}]
  %s2 = inlined_call_operand.vmem [shape: f32[1,64], index: 2, kind: input, shape index: {}]
  %s3 = inlined_call_operand.hbm [shape: bf16[2,16,16,64], index: 3, kind: output, shape index: {}]
  %s4 = sld [smem:[#allocation0]]
  $region45: #{tpu_custom_call.1} parent=0
    _
  %s6 = ssub.s32 1, %s4
  %s7 = scalar_select 0, %s6, %s4
  $region1: #{tpu_custom_call.1} parent=0
    #allocation2 [shape = 'u8[131072]{0}', space=vmem, size = 0x20000, scoped, tag = 'output window, operand 0']
    #allocation3 [shape = 's32[2]{0}', space=sflag, size = 0x8, scoped, tag = 'scoped memory for tpu_custom_call.1']
    %8 = vsyncpa [#allocation3], 0
    %s9 = scalar_lea.sflag [#allocation3], 1
    %10 = vsyncpa %s9, 0
    loop: start=0, step=1, limit=4
    $region2: #{tpu_custom_call.1} parent=1 // loop_pre_header
      _
    $region3: #{tpu_custom_call.1} parent=1 // loop_header
      %s12 = sphi 0, %s16
      %p13 = scmp.ge.s32.totalorder %s12, 4
      %s19 = sphi 0, %s31
      %s20 = sphi 0, %s27
      %s21 = sphi 0, %s19
      %s22 = sphi 0, %s20
      %s23 = sphi 0, %s21
      %s24 = sphi 0, %s22
      %s34 = sphi 0, %s36
      %s37 = sphi 0, %s34
      %s38 = sphi 0, %s37
      %s54 = sphi 0, %s38
      %s58 = sphi 0, %s58
      %s60 = sphi 0, %s58
      %s61 = sphi 0, %s60
      %s75 = sphi 0, %s61
      %s79 = sphi 0, %s79
      %s81 = sphi 0, %s79
      %s82 = sphi 0, %s81
      %s96 = sphi 0, %s82
      %s104 = sphi 0, %s106
      %s107 = sphi 0, %s104
      %s108 = sphi 0, %s107
      %s124 = sphi 0, %s108
    $region4: #{tpu_custom_call.1} parent=1 // loop_header_branch
      %15 = sbr.rel (%p13) target = $region8
    $region5: #{tpu_custom_call.1} parent=1 // loop_body
      %s17 = ssub.s32 %s12, 1
      %s18 = ssub.s32 %s12, 2
      %s25 = sadd.s32 1, %s20
      %p26 = scmp.ge.s32.totalorder %s25, 1
      %s27 = scalar_select %p26, 0, %s25
      %s28 = sadd.s32 1, %s19
      %s29 = scalar_select %p26, %s28, %s19
      %p30 = scmp.ge.s32.totalorder %s29, 2
      %s31 = scalar_select %p30, 0, %s29
      %s32 = ssub.s32 %s19, %s31
      %p33 = scmp.eq.s32.totalorder %s32, 0
      %s35 = sadd.s32 %s34, 1
      %s36 = scalar_select %p33, %s34, %s35
      %p39 = pneg %p33
      %p40 = scmp.eq.s32.totalorder %s12, 1
      %p41 = por %p39, %p40
      %p42 = scmp.ne.s32.totalorder %s34, %s37
      %p43 = scmp.eq.s32.totalorder %s12, 0
      %p44 = por %p42, %p43
      %p45 = scmp.ne.s32.totalorder %s34, %s37
      %p46 = scmp.eq.s32.totalorder %s17, 1
      %p47 = por %p45, %p46
      %p48 = scmp.ne.s32.totalorder %s37, %s38
      %p49 = scmp.eq.s32.totalorder %s17, 0
      %p50 = por %p48, %p49
      %p51 = scmp.ne.s32.totalorder %s37, %s38
      %p52 = scmp.eq.s32.totalorder %s18, 1
      %p53 = por %p51, %p52
      %p55 = scmp.ne.s32.totalorder %s38, %s54
      %p56 = scmp.eq.s32.totalorder %s18, 0
      %p57 = por %p55, %p56
      %s59 = sadd.s32 %s58, 1
      %p62 = scmp.eq.s32.totalorder %s12, 1
      %p63 = scmp.ne.s32.totalorder %s58, %s60
      %p64 = scmp.eq.s32.totalorder %s12, 0
      %p65 = por %p63, %p64
      %p66 = scmp.ne.s32.totalorder %s58, %s60
      %p67 = scmp.eq.s32.totalorder %s17, 1
      %p68 = por %p66, %p67
      %p69 = scmp.ne.s32.totalorder %s60, %s61
      %p70 = scmp.eq.s32.totalorder %s17, 0
      %p71 = por %p69, %p70
      %p72 = scmp.ne.s32.totalorder %s60, %s61
      %p73 = scmp.eq.s32.totalorder %s18, 1
      %p74 = por %p72, %p73
      %p76 = scmp.ne.s32.totalorder %s61, %s75
      %p77 = scmp.eq.s32.totalorder %s18, 0
      %p78 = por %p76, %p77
      %s80 = sadd.s32 %s79, 1
      %p83 = scmp.eq.s32.totalorder %s12, 1
      %p84 = scmp.ne.s32.totalorder %s79, %s81
      %p85 = scmp.eq.s32.totalorder %s12, 0
      %p86 = por %p84, %p85
      %p87 = scmp.ne.s32.totalorder %s79, %s81
      %p88 = scmp.eq.s32.totalorder %s17, 1
      %p89 = por %p87, %p88
      %p90 = scmp.ne.s32.totalorder %s81, %s82
      %p91 = scmp.eq.s32.totalorder %s17, 0
      %p92 = por %p90, %p91
      %p93 = scmp.ne.s32.totalorder %s81, %s82
      %p94 = scmp.eq.s32.totalorder %s18, 1
      %p95 = por %p93, %p94
      %p97 = scmp.ne.s32.totalorder %s82, %s96
      %p98 = scmp.eq.s32.totalorder %s18, 0
      %p99 = por %p97, %p98
      %s100 = ssub.s32 %s19, %s31
      %s101 = ssub.s32 %s20, %s27
      %s102 = sor.u32 %s100, %s101
      %p103 = scmp.eq.s32.totalorder %s102, 0
      %s105 = sadd.s32 %s104, 1
      %s106 = scalar_select %p103, %s104, %s105
      %p109 = pneg %p103
      %p110 = scmp.eq.s32.totalorder %s12, 1
      %p111 = por %p109, %p110
      %p112 = scmp.ne.s32.totalorder %s104, %s107
      %p113 = scmp.eq.s32.totalorder %s12, 0
      %p114 = por %p112, %p113
      %p115 = scmp.ne.s32.totalorder %s104, %s107
      %p116 = scmp.eq.s32.totalorder %s17, 1
      %p117 = por %p115, %p116
      %p118 = scmp.ne.s32.totalorder %s107, %s108
      %p119 = scmp.eq.s32.totalorder %s17, 0
      %p120 = por %p118, %p119
      %p121 = scmp.ne.s32.totalorder %s107, %s108
      %p122 = scmp.eq.s32.totalorder %s18, 1
      %p123 = por %p121, %p122
      %p125 = scmp.ne.s32.totalorder %s108, %s124
      %p126 = scmp.eq.s32.totalorder %s18, 0
      %p127 = por %p125, %p126
      %p128 = scmp.le.s32.totalorder 1, %s12
      %p129 = scmp.lt.s32.totalorder %s12, 3
      %p130 = pnand %p128, %p129
      %p131 = pneg %p130
      // Predicated region
      $region9: #{tpu_custom_call.1} parent=5 // pred_check
        _
      $region10: #{tpu_custom_call.1} parent=5 // pred_check_branch
        %133 = sbr.rel (%p130) target = $region12
      $region11: #{tpu_custom_call.1} parent=5 // pred_region
        %s134 = ssub.s32 %s12, 1
        // Predicated region
        $region13: #{tpu_custom_call.1} parent=11 // pred_check
          %p135 = pneg %p71
        $region14: #{tpu_custom_call.1} parent=11 // pred_check_branch
          %137 = sbr.rel (%p135) target = $region16
        $region15: #{tpu_custom_call.1} parent=11 // pred_region
          _
        $region16: #{tpu_custom_call.1} parent=11 // pred_fallthru
          _
        // Predicated region
        $region17: #{tpu_custom_call.1} parent=11 // pred_check
          %p138 = pneg %p92
        $region18: #{tpu_custom_call.1} parent=11 // pred_check_branch
          %140 = sbr.rel (%p138) target = $region20
        $region19: #{tpu_custom_call.1} parent=11 // pred_region
          _
        $region20: #{tpu_custom_call.1} parent=11 // pred_fallthru
          _
      $region12: #{tpu_custom_call.1} parent=5 // pred_fallthru
        _
      %p141 = scmp.lt.s32.totalorder %s12, 2
      // Predicated region
      $region21: #{tpu_custom_call.1} parent=5 // pred_check
        %p142 = pneg %p141
      $region22: #{tpu_custom_call.1} parent=5 // pred_check_branch
        %144 = sbr.rel (%p142) target = $region24
      $region23: #{tpu_custom_call.1} parent=5 // pred_region
        // Predicated region
        $region25: #{tpu_custom_call.1} parent=23 // pred_check
          %p145 = pneg %p44
        $region26: #{tpu_custom_call.1} parent=23 // pred_check_branch
          %147 = sbr.rel (%p145) target = $region28
        $region27: #{tpu_custom_call.1} parent=23 // pred_region
          %p148 = scmp.lt.s32.totalorder %s19, 1
          %s149 = scalar_select %p148, %s19, 1
          %s150 = smul.addr %s149, 51
          %s151 = smul.addr %s150, 4
          %s152 = scalar_lea.vmem %s0, %s151
        $region28: #{tpu_custom_call.1} parent=23 // pred_fallthru
          _
      $region24: #{tpu_custom_call.1} parent=5 // pred_fallthru
        _
      %p153 = scmp.le.s32.totalorder 1, %s12
      %p154 = scmp.lt.s32.totalorder %s12, 3
      %p155 = pnand %p153, %p154
      %p156 = pneg %p155
      // Predicated region
      $region29: #{tpu_custom_call.1} parent=5 // pred_check
        _
      $region30: #{tpu_custom_call.1} parent=5 // pred_check_branch
        %158 = sbr.rel (%p155) target = $region32
      $region31: #{tpu_custom_call.1} parent=5 // pred_region
        %s159 = ssub.s32 %s12, 1
        %p160 = scmp.lt.s32.totalorder %s21, 1
        %s161 = scalar_select %p160, %s21, 1
        %s162 = smul.addr %s161, 51
        %s163 = smul.addr %s162, 4
        %s164 = scalar_lea.vmem %s0, %s163
        %p165 = pneg %p50
        %p166 = pneg %p47
        %p167 = pneg %p71
        %p168 = pneg %p68
        %p169 = pneg %p92
        %p170 = pneg %p89
        %p171 = pneg %p120
        %p172 = pneg %p117
        %s173 = sand.u32 %s107, 1
        %s174 = scalar_lea.sflag [#allocation3], %s173
        %s175 = sand.u32 %s107, 1
        %s176 = smul.addr %s175, 128
        %s177 = scalar_lea.vmem [#allocation2], %s176
        %p178 = scmp.lt.s32.totalorder %s21, 1
        %s179 = scalar_select %p178, %s21, 1
        %s180 = smul.addr %s179, 51
        %s181 = smul.addr %s180, 4
        %s182 = scalar_lea.vmem %s0, %s181
        %s183 = smul.u32 16, %s22
        %s185 = smul.u32 %s22, 16
        %s186 = smul.u32 %s185, 3
        %s187 = smul.addr %s186, 4
        %s188 = scalar_lea.vmem %s182, %s187
        %v189 = vld [vmem:[%s188] sm:$0xf]
        %v190 = vld [vmem:[%s188 + $0x4] sm:$0xf]
        %v191 = vld [vmem:[%s188 + $0xc] sm:$0xf]
        %v192 = vld [vmem:[%s188 + $0x10] sm:$0xf]
        %v193 = vld [vmem:[%s188 + $0x18] sm:$0xf]
        %v194 = vld [vmem:[%s188 + $0x1c] sm:$0xf]
        %v195 = vld [vmem:[%s188 + $0x24] sm:$0xf]
        %v196 = vld [vmem:[%s188 + $0x28] sm:$0xf]
        %v197 = vld [vmem:[%s188 + $0x30] sm:$0xf]
        %v198 = vld [vmem:[%s188 + $0x34] sm:$0xf]
        %v199 = vld [vmem:[%s188 + $0x3c] sm:$0xf]
        %v200 = vld [vmem:[%s188 + $0x40] sm:$0xf]
        %v201 = vld [vmem:[%s188 + $0x48] sm:$0xf]
        %v202 = vld [vmem:[%s188 + $0x4c] sm:$0xf]
        %v203 = vld [vmem:[%s188 + $0x54] sm:$0xf]
        %v204 = vld [vmem:[%s188 + $0x58] sm:$0xf]
        %v205 = vld [vmem:[%s188 + $0x60] sm:$0xf]
        %v206 = vld [vmem:[%s188 + $0x64] sm:$0xf]
        %v207 = vld [vmem:[%s188 + $0x6c] sm:$0xf]
        %v208 = vld [vmem:[%s188 + $0x70] sm:$0xf]
        %v209 = vld [vmem:[%s188 + $0x78] sm:$0xf]
        %v210 = vld [vmem:[%s188 + $0x7c] sm:$0xf]
        %v211 = vld [vmem:[%s188 + $0x84] sm:$0xf]
        %v212 = vld [vmem:[%s188 + $0x88] sm:$0xf]
        %v213 = vld [vmem:[%s188 + $0x90] sm:$0xf]
        %v214 = vld [vmem:[%s188 + $0x94] sm:$0xf]
        %v215 = vld [vmem:[%s188 + $0x9c] sm:$0xf]
        %v216 = vld [vmem:[%s188 + $0xa0] sm:$0xf]
        %v217 = vld [vmem:[%s188 + $0xa8] sm:$0xf]
        %v218 = vld [vmem:[%s188 + $0xac] sm:$0xf]
        %v219 = vld [vmem:[%s188 + $0xb4] sm:$0xf]
        %v220 = vld [vmem:[%s188 + $0xb8] sm:$0xf]
        %v221 = vld [vmem:[%s1] sm:$0xf]
        %v222 = vld [vmem:[%s1 + $0x4] sm:$0xf]
        %v223 = vld [vmem:[%s1 + $0x8] sm:$0xf]
        %v224 = vld [vmem:[%s188 + $0x8] sm:$0x1]
        %v225 = vld [vmem:[%s188 + $0x14] sm:$0x1]
        %v226 = vld [vmem:[%s188 + $0x20] sm:$0x1]
        %v227 = vld [vmem:[%s188 + $0x2c] sm:$0x1]
        %v228 = vld [vmem:[%s188 + $0x38] sm:$0x1]
        %v229 = vld [vmem:[%s188 + $0x44] sm:$0x1]
        %v230 = vld [vmem:[%s188 + $0x50] sm:$0x1]
        %v231 = vld [vmem:[%s188 + $0x5c] sm:$0x1]
        %v232 = vld [vmem:[%s188 + $0x68] sm:$0x1]
        %v233 = vld [vmem:[%s188 + $0x74] sm:$0x1]
        %v234 = vld [vmem:[%s188 + $0x80] sm:$0x1]
        %v235 = vld [vmem:[%s188 + $0x8c] sm:$0x1]
        %v236 = vld [vmem:[%s188 + $0x98] sm:$0x1]
        %v237 = vld [vmem:[%s188 + $0xa4] sm:$0x1]
        %v238 = vld [vmem:[%s188 + $0xb0] sm:$0x1]
        %v239 = vld [vmem:[%s188 + $0xbc] sm:$0x1]
        %vm240 = vsmask.f32 3328
        %vm241 = vsmask.f32 7440
        %vm242 = vmor %vm240, %vm241
        %v244 = vshrl.u32 %v189, 16
        %v246 = vrot.slane %v244, 4
        %v247 = vshll.u32 %v189, 16
        %v249 = vrot.slane %v247, 5
        %v250 = vor.u32 %v246, %v249
        %v251 = vrot.slane %v250, 4
        %v253 = vshll.u32 %v190, 16
        %v255 = vrot.slane %v253, 5
        %v256 = vsel %vm242, %v251, %v255
        %v257 = vshrl.u32 %v190, 16
        %v259 = vrot.slane %v257, 4
        %v260 = vor.u32 %v259, %v255
        %v261 = vrot.slane %v260, 4
        %v263 = vshll.u32 %v224, 16
        %v265 = vrot.slane %v263, 5
        %v266 = vsel %vm242, %v261, %v265
        %v268 = vshrl.u32 %v191, 16
        %v270 = vrot.slane %v268, 4
        %v271 = vshll.u32 %v191, 16
        %v273 = vrot.slane %v271, 5
        %v274 = vor.u32 %v270, %v273
        %v275 = vrot.slane %v274, 4
        %v277 = vshll.u32 %v192, 16
        %v279 = vrot.slane %v277, 5
        %v280 = vsel %vm242, %v275, %v279
        %v281 = vshrl.u32 %v192, 16
        %v283 = vrot.slane %v281, 4
        %v284 = vor.u32 %v283, %v279
        %v285 = vrot.slane %v284, 4
        %v287 = vshll.u32 %v225, 16
        %v289 = vrot.slane %v287, 5
        %v290 = vsel %vm242, %v285, %v289
        %v292 = vshrl.u32 %v193, 16
        %v294 = vrot.slane %v292, 4
        %v295 = vshll.u32 %v193, 16
        %v297 = vrot.slane %v295, 5
        %v298 = vor.u32 %v294, %v297
        %v299 = vrot.slane %v298, 4
        %v301 = vshll.u32 %v194, 16
        %v303 = vrot.slane %v301, 5
        %v304 = vsel %vm242, %v299, %v303
        %v305 = vshrl.u32 %v194, 16
        %v307 = vrot.slane %v305, 4
        %v308 = vor.u32 %v307, %v303
        %v309 = vrot.slane %v308, 4
        %v311 = vshll.u32 %v226, 16
        %v313 = vrot.slane %v311, 5
        %v314 = vsel %vm242, %v309, %v313
        %v316 = vshrl.u32 %v195, 16
        %v318 = vrot.slane %v316, 4
        %v319 = vshll.u32 %v195, 16
        %v321 = vrot.slane %v319, 5
        %v322 = vor.u32 %v318, %v321
        %v323 = vrot.slane %v322, 4
        %v325 = vshll.u32 %v196, 16
        %v327 = vrot.slane %v325, 5
        %v328 = vsel %vm242, %v323, %v327
        %v329 = vshrl.u32 %v196, 16
        %v331 = vrot.slane %v329, 4
        %v332 = vor.u32 %v331, %v327
        %v333 = vrot.slane %v332, 4
        %v335 = vshll.u32 %v227, 16
        %v337 = vrot.slane %v335, 5
        %v338 = vsel %vm242, %v333, %v337
        %v340 = vshrl.u32 %v197, 16
        %v342 = vrot.slane %v340, 4
        %v343 = vshll.u32 %v197, 16
        %v345 = vrot.slane %v343, 5
        %v346 = vor.u32 %v342, %v345
        %v347 = vrot.slane %v346, 4
        %v349 = vshll.u32 %v198, 16
        %v351 = vrot.slane %v349, 5
        %v352 = vsel %vm242, %v347, %v351
        %v353 = vshrl.u32 %v198, 16
        %v355 = vrot.slane %v353, 4
        %v356 = vor.u32 %v355, %v351
        %v357 = vrot.slane %v356, 4
        %v359 = vshll.u32 %v228, 16
        %v361 = vrot.slane %v359, 5
        %v362 = vsel %vm242, %v357, %v361
        %v364 = vshrl.u32 %v199, 16
        %v366 = vrot.slane %v364, 4
        %v367 = vshll.u32 %v199, 16
        %v369 = vrot.slane %v367, 5
        %v370 = vor.u32 %v366, %v369
        %v371 = vrot.slane %v370, 4
        %v373 = vshll.u32 %v200, 16
        %v375 = vrot.slane %v373, 5
        %v376 = vsel %vm242, %v371, %v375
        %v377 = vshrl.u32 %v200, 16
        %v379 = vrot.slane %v377, 4
        %v380 = vor.u32 %v379, %v375
        %v381 = vrot.slane %v380, 4
        %v383 = vshll.u32 %v229, 16
        %v385 = vrot.slane %v383, 5
        %v386 = vsel %vm242, %v381, %v385
        %v388 = vshrl.u32 %v201, 16
        %v390 = vrot.slane %v388, 4
        %v391 = vshll.u32 %v201, 16
        %v393 = vrot.slane %v391, 5
        %v394 = vor.u32 %v390, %v393
        %v395 = vrot.slane %v394, 4
        %v397 = vshll.u32 %v202, 16
        %v399 = vrot.slane %v397, 5
        %v400 = vsel %vm242, %v395, %v399
        %v401 = vshrl.u32 %v202, 16
        %v403 = vrot.slane %v401, 4
        %v404 = vor.u32 %v403, %v399
        %v405 = vrot.slane %v404, 4
        %v407 = vshll.u32 %v230, 16
        %v409 = vrot.slane %v407, 5
        %v410 = vsel %vm242, %v405, %v409
        %v412 = vshrl.u32 %v203, 16
        %v414 = vrot.slane %v412, 4
        %v415 = vshll.u32 %v203, 16
        %v417 = vrot.slane %v415, 5
        %v418 = vor.u32 %v414, %v417
        %v419 = vrot.slane %v418, 4
        %v421 = vshll.u32 %v204, 16
        %v423 = vrot.slane %v421, 5
        %v424 = vsel %vm242, %v419, %v423
        %v425 = vshrl.u32 %v204, 16
        %v427 = vrot.slane %v425, 4
        %v428 = vor.u32 %v427, %v423
        %v429 = vrot.slane %v428, 4
        %v431 = vshll.u32 %v231, 16
        %v433 = vrot.slane %v431, 5
        %v434 = vsel %vm242, %v429, %v433
        %v436 = vshrl.u32 %v205, 16
        %v438 = vrot.slane %v436, 4
        %v439 = vshll.u32 %v205, 16
        %v441 = vrot.slane %v439, 5
        %v442 = vor.u32 %v438, %v441
        %v443 = vrot.slane %v442, 4
        %v445 = vshll.u32 %v206, 16
        %v447 = vrot.slane %v445, 5
        %v448 = vsel %vm242, %v443, %v447
        %v449 = vshrl.u32 %v206, 16
        %v451 = vrot.slane %v449, 4
        %v452 = vor.u32 %v451, %v447
        %v453 = vrot.slane %v452, 4
        %v455 = vshll.u32 %v232, 16
        %v457 = vrot.slane %v455, 5
        %v458 = vsel %vm242, %v453, %v457
        %v460 = vshrl.u32 %v207, 16
        %v462 = vrot.slane %v460, 4
        %v463 = vshll.u32 %v207, 16
        %v465 = vrot.slane %v463, 5
        %v466 = vor.u32 %v462, %v465
        %v467 = vrot.slane %v466, 4
        %v469 = vshll.u32 %v208, 16
        %v471 = vrot.slane %v469, 5
        %v472 = vsel %vm242, %v467, %v471
        %v473 = vshrl.u32 %v208, 16
        %v475 = vrot.slane %v473, 4
        %v476 = vor.u32 %v475, %v471
        %v477 = vrot.slane %v476, 4
        %v479 = vshll.u32 %v233, 16
        %v481 = vrot.slane %v479, 5
        %v482 = vsel %vm242, %v477, %v481
        %v484 = vshrl.u32 %v209, 16
        %v486 = vrot.slane %v484, 4
        %v487 = vshll.u32 %v209, 16
        %v489 = vrot.slane %v487, 5
        %v490 = vor.u32 %v486, %v489
        %v491 = vrot.slane %v490, 4
        %v493 = vshll.u32 %v210, 16
        %v495 = vrot.slane %v493, 5
        %v496 = vsel %vm242, %v491, %v495
        %v497 = vshrl.u32 %v210, 16
        %v499 = vrot.slane %v497, 4
        %v500 = vor.u32 %v499, %v495
        %v501 = vrot.slane %v500, 4
        %v503 = vshll.u32 %v234, 16
        %v505 = vrot.slane %v503, 5
        %v506 = vsel %vm242, %v501, %v505
        %v508 = vshrl.u32 %v211, 16
        %v510 = vrot.slane %v508, 4
        %v511 = vshll.u32 %v211, 16
        %v513 = vrot.slane %v511, 5
        %v514 = vor.u32 %v510, %v513
        %v515 = vrot.slane %v514, 4
        %v517 = vshll.u32 %v212, 16
        %v519 = vrot.slane %v517, 5
        %v520 = vsel %vm242, %v515, %v519
        %v521 = vshrl.u32 %v212, 16
        %v523 = vrot.slane %v521, 4
        %v524 = vor.u32 %v523, %v519
        %v525 = vrot.slane %v524, 4
        %v527 = vshll.u32 %v235, 16
        %v529 = vrot.slane %v527, 5
        %v530 = vsel %vm242, %v525, %v529
        %v532 = vshrl.u32 %v213, 16
        %v534 = vrot.slane %v532, 4
        %v535 = vshll.u32 %v213, 16
        %v537 = vrot.slane %v535, 5
        %v538 = vor.u32 %v534, %v537
        %v539 = vrot.slane %v538, 4
        %v541 = vshll.u32 %v214, 16
        %v543 = vrot.slane %v541, 5
        %v544 = vsel %vm242, %v539, %v543
        %v545 = vshrl.u32 %v214, 16
        %v547 = vrot.slane %v545, 4
        %v548 = vor.u32 %v547, %v543
        %v549 = vrot.slane %v548, 4
        %v551 = vshll.u32 %v236, 16
        %v553 = vrot.slane %v551, 5
        %v554 = vsel %vm242, %v549, %v553
        %v556 = vshrl.u32 %v215, 16
        %v558 = vrot.slane %v556, 4
        %v559 = vshll.u32 %v215, 16
        %v561 = vrot.slane %v559, 5
        %v562 = vor.u32 %v558, %v561
        %v563 = vrot.slane %v562, 4
        %v565 = vshll.u32 %v216, 16
        %v567 = vrot.slane %v565, 5
        %v568 = vsel %vm242, %v563, %v567
        %v569 = vshrl.u32 %v216, 16
        %v571 = vrot.slane %v569, 4
        %v572 = vor.u32 %v571, %v567
        %v573 = vrot.slane %v572, 4
        %v575 = vshll.u32 %v237, 16
        %v577 = vrot.slane %v575, 5
        %v578 = vsel %vm242, %v573, %v577
        %v580 = vshrl.u32 %v217, 16
        %v582 = vrot.slane %v580, 4
        %v583 = vshll.u32 %v217, 16
        %v585 = vrot.slane %v583, 5
        %v586 = vor.u32 %v582, %v585
        %v587 = vrot.slane %v586, 4
        %v589 = vshll.u32 %v218, 16
        %v591 = vrot.slane %v589, 5
        %v592 = vsel %vm242, %v587, %v591
        %v593 = vshrl.u32 %v218, 16
        %v595 = vrot.slane %v593, 4
        %v596 = vor.u32 %v595, %v591
        %v597 = vrot.slane %v596, 4
        %v599 = vshll.u32 %v238, 16
        %v601 = vrot.slane %v599, 5
        %v602 = vsel %vm242, %v597, %v601
        %v604 = vshrl.u32 %v219, 16
        %v606 = vrot.slane %v604, 4
        %v607 = vshll.u32 %v219, 16
        %v609 = vrot.slane %v607, 5
        %v610 = vor.u32 %v606, %v609
        %v611 = vrot.slane %v610, 4
        %v613 = vshll.u32 %v220, 16
        %v615 = vrot.slane %v613, 5
        %v616 = vsel %vm242, %v611, %v615
        %v617 = vshrl.u32 %v220, 16
        %v619 = vrot.slane %v617, 4
        %v620 = vor.u32 %v619, %v615
        %v621 = vrot.slane %v620, 4
        %v623 = vshll.u32 %v239, 16
        %v625 = vrot.slane %v623, 5
        %v626 = vsel %vm242, %v621, %v625
        %s627 = scalar_lea.vmem %s1, 12
        %v628 = vld [vmem:[%s627] sm:$0xf]
        %v629 = vld [vmem:[%s627 + $0x4] sm:$0xf]
        %v630 = vld [vmem:[%s627 + $0x8] sm:$0xf]
        %v631 = vunpack.c.l.b16 %v256
        %v632 = vunpack.c.l.b16 %v266
        %v633 = vunpack.c.l.b16 %v280
        %v634 = vunpack.c.l.b16 %v290
        %v635 = vunpack.c.l.b16 %v304
        %v636 = vunpack.c.l.b16 %v314
        %v637 = vunpack.c.l.b16 %v328
        %v638 = vunpack.c.l.b16 %v338
        %v639 = vunpack.c.l.b16 %v352
        %v640 = vunpack.c.l.b16 %v362
        %v641 = vunpack.c.l.b16 %v376
        %v642 = vunpack.c.l.b16 %v386
        %v643 = vunpack.c.l.b16 %v400
        %v644 = vunpack.c.l.b16 %v410
        %v645 = vunpack.c.l.b16 %v424
        %v646 = vunpack.c.l.b16 %v434
        %v647 = vunpack.c.l.b16 %v448
        %v648 = vunpack.c.l.b16 %v458
        %v649 = vunpack.c.l.b16 %v472
        %v650 = vunpack.c.l.b16 %v482
        %v651 = vunpack.c.l.b16 %v496
        %v652 = vunpack.c.l.b16 %v506
        %v653 = vunpack.c.l.b16 %v520
        %v654 = vunpack.c.l.b16 %v530
        %v655 = vunpack.c.l.b16 %v544
        %v656 = vunpack.c.l.b16 %v554
        %v657 = vunpack.c.l.b16 %v568
        %v658 = vunpack.c.l.b16 %v578
        %v659 = vunpack.c.l.b16 %v592
        %v660 = vunpack.c.l.b16 %v602
        %v661 = vunpack.c.l.b16 %v616
        %v662 = vunpack.c.l.b16 %v626
        %v663 = vpack.c.b16 %v632, %v631
        %v664 = vpack.c.b16 %v634, %v633
        %v665 = vpack.c.b16 %v636, %v635
        %v666 = vpack.c.b16 %v638, %v637
        %v667 = vpack.c.b16 %v640, %v639
        %v668 = vpack.c.b16 %v642, %v641
        %v669 = vpack.c.b16 %v644, %v643
        %v670 = vpack.c.b16 %v646, %v645
        %v671 = vpack.c.b16 %v648, %v647
        %v672 = vpack.c.b16 %v650, %v649
        %v673 = vpack.c.b16 %v652, %v651
        %v674 = vpack.c.b16 %v654, %v653
        %v675 = vpack.c.b16 %v656, %v655
        %v676 = vpack.c.b16 %v658, %v657
        %v677 = vpack.c.b16 %v660, %v659
        %v678 = vpack.c.b16 %v662, %v661
        %v682 = vunpack.c.l.b16 %v628
        %v683 = vunpack.c.l.b16 %v629
        %v684 = vunpack.c.l.b16 %v630
        %v685 = vpack.c.b16 %v683, %v682
        %v686 = vpack.c.b16 %v684, %v684
        %vm688 = vcmask 195584
        %v690 = vsel %vm688, %v663, 0
        %v693 = vsel %vm688, %v664, 0
        %v696 = vsel %vm688, %v665, 0
        %v699 = vsel %vm688, %v666, 0
        %v702 = vsel %vm688, %v667, 0
        %v705 = vsel %vm688, %v668, 0
        %v708 = vsel %vm688, %v669, 0
        %v711 = vsel %vm688, %v670, 0
        %v714 = vsel %vm688, %v671, 0
        %v717 = vsel %vm688, %v672, 0
        %v720 = vsel %vm688, %v673, 0
        %v723 = vsel %vm688, %v674, 0
        %v726 = vsel %vm688, %v675, 0
        %v729 = vsel %vm688, %v676, 0
        %v732 = vsel %vm688, %v677, 0
        %v735 = vsel %vm688, %v678, 0
        %vm737 = vcmask 1043456
        %v739 = vsel %vm737, %v686, 0
        %741 = vmatpush.bf16.msra.mxu0 0
        %742 = vmatpush.bf16.msra.mxu0 0
        %743 = vmatpush.bf16.msra.mxu0 0
        %744 = vmatpush.bf16.msra.mxu0 0
        %745 = vmatpush.bf16.msra.mxu0 0
        %746 = vmatpush.bf16.msra.mxu0 0
        %747 = vmatpush.bf16.msra.mxu0 %v739
        %748 = vmatpush.bf16.msra.mxu0 %v685
        %749 = vmatmul.bf16.gmra.mxu0 %v690
        %v750 = vpop.f32.mrf.mxu0
        %v751 = vadd.f32 0.0, %v750
        %v752 = vpop.f32.mrf.mxu0
        %v753 = vadd.f32 0.0, %v752
        %754 = vmatmul.bf16.gmra.mxu0 %v693
        %v755 = vpop.f32.mrf.mxu0
        %v756 = vadd.f32 0.0, %v755
        %v757 = vpop.f32.mrf.mxu0
        %v758 = vadd.f32 0.0, %v757
        %759 = vmatmul.bf16.gmra.mxu0 %v696
        %v760 = vpop.f32.mrf.mxu0
        %v761 = vadd.f32 0.0, %v760
        %v762 = vpop.f32.mrf.mxu0
        %v763 = vadd.f32 0.0, %v762
        %764 = vmatmul.bf16.gmra.mxu0 %v699
        %v765 = vpop.f32.mrf.mxu0
        %v766 = vadd.f32 0.0, %v765
        %v767 = vpop.f32.mrf.mxu0
        %v768 = vadd.f32 0.0, %v767
        %769 = vmatmul.bf16.gmra.mxu0 %v702
        %v770 = vpop.f32.mrf.mxu0
        %v771 = vadd.f32 0.0, %v770
        %v772 = vpop.f32.mrf.mxu0
        %v773 = vadd.f32 0.0, %v772
        %774 = vmatmul.bf16.gmra.mxu0 %v705
        %v775 = vpop.f32.mrf.mxu0
        %v776 = vadd.f32 0.0, %v775
        %v777 = vpop.f32.mrf.mxu0
        %v778 = vadd.f32 0.0, %v777
        %779 = vmatmul.bf16.gmra.mxu0 %v708
        %v780 = vpop.f32.mrf.mxu0
        %v781 = vadd.f32 0.0, %v780
        %v782 = vpop.f32.mrf.mxu0
        %v783 = vadd.f32 0.0, %v782
        %784 = vmatmul.bf16.gmra.mxu0 %v711
        %v785 = vpop.f32.mrf.mxu0
        %v786 = vadd.f32 0.0, %v785
        %v787 = vpop.f32.mrf.mxu0
        %v788 = vadd.f32 0.0, %v787
        %789 = vmatmul.bf16.gmra.mxu0 %v714
        %v790 = vpop.f32.mrf.mxu0
        %v791 = vadd.f32 0.0, %v790
        %v792 = vpop.f32.mrf.mxu0
        %v793 = vadd.f32 0.0, %v792
        %794 = vmatmul.bf16.gmra.mxu0 %v717
        %v795 = vpop.f32.mrf.mxu0
        %v796 = vadd.f32 0.0, %v795
        %v797 = vpop.f32.mrf.mxu0
        %v798 = vadd.f32 0.0, %v797
        %799 = vmatmul.bf16.gmra.mxu0 %v720
        %v800 = vpop.f32.mrf.mxu0
        %v801 = vadd.f32 0.0, %v800
        %v802 = vpop.f32.mrf.mxu0
        %v803 = vadd.f32 0.0, %v802
        %804 = vmatmul.bf16.gmra.mxu0 %v723
        %v805 = vpop.f32.mrf.mxu0
        %v806 = vadd.f32 0.0, %v805
        %v807 = vpop.f32.mrf.mxu0
        %v808 = vadd.f32 0.0, %v807
        %809 = vmatmul.bf16.gmra.mxu0 %v726
        %v810 = vpop.f32.mrf.mxu0
        %v811 = vadd.f32 0.0, %v810
        %v812 = vpop.f32.mrf.mxu0
        %v813 = vadd.f32 0.0, %v812
        %814 = vmatmul.bf16.gmra.mxu0 %v729
        %v815 = vpop.f32.mrf.mxu0
        %v816 = vadd.f32 0.0, %v815
        %v817 = vpop.f32.mrf.mxu0
        %v818 = vadd.f32 0.0, %v817
        %819 = vmatmul.bf16.gmra.mxu0 %v732
        %v820 = vpop.f32.mrf.mxu0
        %v821 = vadd.f32 0.0, %v820
        %v822 = vpop.f32.mrf.mxu0
        %v823 = vadd.f32 0.0, %v822
        %824 = vmatmul.bf16.gmra.mxu0 %v735
        %v825 = vpop.f32.mrf.mxu0
        %v826 = vadd.f32 0.0, %v825
        %v827 = vpop.f32.mrf.mxu0
        %v828 = vadd.f32 0.0, %v827
        %829 = vdwg.mxu0
        %v862 = vunpack.c.l.b16 %v189
        %v863 = vunpack.c.l.b16 %v190
        %v864 = vunpack.c.l.b16 %v191
        %v865 = vunpack.c.l.b16 %v192
        %v866 = vunpack.c.l.b16 %v193
        %v867 = vunpack.c.l.b16 %v194
        %v868 = vunpack.c.l.b16 %v195
        %v869 = vunpack.c.l.b16 %v196
        %v870 = vunpack.c.l.b16 %v197
        %v871 = vunpack.c.l.b16 %v198
        %v872 = vunpack.c.l.b16 %v199
        %v873 = vunpack.c.l.b16 %v200
        %v874 = vunpack.c.l.b16 %v201
        %v875 = vunpack.c.l.b16 %v202
        %v876 = vunpack.c.l.b16 %v203
        %v877 = vunpack.c.l.b16 %v204
        %v878 = vunpack.c.l.b16 %v205
        %v879 = vunpack.c.l.b16 %v206
        %v880 = vunpack.c.l.b16 %v207
        %v881 = vunpack.c.l.b16 %v208
        %v882 = vunpack.c.l.b16 %v209
        %v883 = vunpack.c.l.b16 %v210
        %v884 = vunpack.c.l.b16 %v211
        %v885 = vunpack.c.l.b16 %v212
        %v886 = vunpack.c.l.b16 %v213
        %v887 = vunpack.c.l.b16 %v214
        %v888 = vunpack.c.l.b16 %v215
        %v889 = vunpack.c.l.b16 %v216
        %v890 = vunpack.c.l.b16 %v217
        %v891 = vunpack.c.l.b16 %v218
        %v892 = vunpack.c.l.b16 %v219
        %v893 = vunpack.c.l.b16 %v220
        %v894 = vpack.c.b16 %v863, %v862
        %v895 = vpack.c.b16 %v865, %v864
        %v896 = vpack.c.b16 %v867, %v866
        %v897 = vpack.c.b16 %v869, %v868
        %v898 = vpack.c.b16 %v871, %v870
        %v899 = vpack.c.b16 %v873, %v872
        %v900 = vpack.c.b16 %v875, %v874
        %v901 = vpack.c.b16 %v877, %v876
        %v902 = vpack.c.b16 %v879, %v878
        %v903 = vpack.c.b16 %v881, %v880
        %v904 = vpack.c.b16 %v883, %v882
        %v905 = vpack.c.b16 %v885, %v884
        %v906 = vpack.c.b16 %v887, %v886
        %v907 = vpack.c.b16 %v889, %v888
        %v908 = vpack.c.b16 %v891, %v890
        %v909 = vpack.c.b16 %v893, %v892
        %v913 = vunpack.c.l.b16 %v221
        %v914 = vunpack.c.l.b16 %v222
        %v915 = vunpack.c.l.b16 %v223
        %v916 = vpack.c.b16 %v914, %v913
        %v917 = vpack.c.b16 %v915, %v915
        %v920 = vsel %vm688, %v894, 0
        %v923 = vsel %vm688, %v895, 0
        %v926 = vsel %vm688, %v896, 0
        %v929 = vsel %vm688, %v897, 0
        %v932 = vsel %vm688, %v898, 0
        %v935 = vsel %vm688, %v899, 0
        %v938 = vsel %vm688, %v900, 0
        %v941 = vsel %vm688, %v901, 0
        %v944 = vsel %vm688, %v902, 0
        %v947 = vsel %vm688, %v903, 0
        %v950 = vsel %vm688, %v904, 0
        %v953 = vsel %vm688, %v905, 0
        %v956 = vsel %vm688, %v906, 0
        %v959 = vsel %vm688, %v907, 0
        %v962 = vsel %vm688, %v908, 0
        %v965 = vsel %vm688, %v909, 0
        %v968 = vsel %vm737, %v917, 0
        %970 = vmatpush.bf16.msra.mxu0 0
        %971 = vmatpush.bf16.msra.mxu0 0
        %972 = vmatpush.bf16.msra.mxu0 0
        %973 = vmatpush.bf16.msra.mxu0 0
        %974 = vmatpush.bf16.msra.mxu0 0
        %975 = vmatpush.bf16.msra.mxu0 0
        %976 = vmatpush.bf16.msra.mxu0 %v968
        %977 = vmatpush.bf16.msra.mxu0 %v916
        %978 = vmatmul.bf16.gmra.mxu0 %v920
        %v979 = vpop.f32.mrf.mxu0
        %v980 = vadd.f32 %v751, %v979
        %v981 = vpop.f32.mrf.mxu0
        %v982 = vadd.f32 %v753, %v981
        %983 = vmatmul.bf16.gmra.mxu0 %v923
        %v984 = vpop.f32.mrf.mxu0
        %v985 = vadd.f32 %v756, %v984
        %v986 = vpop.f32.mrf.mxu0
        %v987 = vadd.f32 %v758, %v986
        %988 = vmatmul.bf16.gmra.mxu0 %v926
        %v989 = vpop.f32.mrf.mxu0
        %v990 = vadd.f32 %v761, %v989
        %v991 = vpop.f32.mrf.mxu0
        %v992 = vadd.f32 %v763, %v991
        %993 = vmatmul.bf16.gmra.mxu0 %v929
        %v994 = vpop.f32.mrf.mxu0
        %v995 = vadd.f32 %v766, %v994
        %v996 = vpop.f32.mrf.mxu0
        %v997 = vadd.f32 %v768, %v996
        %998 = vmatmul.bf16.gmra.mxu0 %v932
        %v999 = vpop.f32.mrf.mxu0
        %v1000 = vadd.f32 %v771, %v999
        %v1001 = vpop.f32.mrf.mxu0
        %v1002 = vadd.f32 %v773, %v1001
        %1003 = vmatmul.bf16.gmra.mxu0 %v935
        %v1004 = vpop.f32.mrf.mxu0
        %v1005 = vadd.f32 %v776, %v1004
        %v1006 = vpop.f32.mrf.mxu0
        %v1007 = vadd.f32 %v778, %v1006
        %1008 = vmatmul.bf16.gmra.mxu0 %v938
        %v1009 = vpop.f32.mrf.mxu0
        %v1010 = vadd.f32 %v781, %v1009
        %v1011 = vpop.f32.mrf.mxu0
        %v1012 = vadd.f32 %v783, %v1011
        %1013 = vmatmul.bf16.gmra.mxu0 %v941
        %v1014 = vpop.f32.mrf.mxu0
        %v1015 = vadd.f32 %v786, %v1014
        %v1016 = vpop.f32.mrf.mxu0
        %v1017 = vadd.f32 %v788, %v1016
        %1018 = vmatmul.bf16.gmra.mxu0 %v944
        %v1019 = vpop.f32.mrf.mxu0
        %v1020 = vadd.f32 %v791, %v1019
        %v1021 = vpop.f32.mrf.mxu0
        %v1022 = vadd.f32 %v793, %v1021
        %1023 = vmatmul.bf16.gmra.mxu0 %v947
        %v1024 = vpop.f32.mrf.mxu0
        %v1025 = vadd.f32 %v796, %v1024
        %v1026 = vpop.f32.mrf.mxu0
        %v1027 = vadd.f32 %v798, %v1026
        %1028 = vmatmul.bf16.gmra.mxu0 %v950
        %v1029 = vpop.f32.mrf.mxu0
        %v1030 = vadd.f32 %v801, %v1029
        %v1031 = vpop.f32.mrf.mxu0
        %v1032 = vadd.f32 %v803, %v1031
        %1033 = vmatmul.bf16.gmra.mxu0 %v953
        %v1034 = vpop.f32.mrf.mxu0
        %v1035 = vadd.f32 %v806, %v1034
        %v1036 = vpop.f32.mrf.mxu0
        %v1037 = vadd.f32 %v808, %v1036
        %1038 = vmatmul.bf16.gmra.mxu0 %v956
        %v1039 = vpop.f32.mrf.mxu0
        %v1040 = vadd.f32 %v811, %v1039
        %v1041 = vpop.f32.mrf.mxu0
        %v1042 = vadd.f32 %v813, %v1041
        %1043 = vmatmul.bf16.gmra.mxu0 %v959
        %v1044 = vpop.f32.mrf.mxu0
        %v1045 = vadd.f32 %v816, %v1044
        %v1046 = vpop.f32.mrf.mxu0
        %v1047 = vadd.f32 %v818, %v1046
        %1048 = vmatmul.bf16.gmra.mxu0 %v962
        %v1049 = vpop.f32.mrf.mxu0
        %v1050 = vadd.f32 %v821, %v1049
        %v1051 = vpop.f32.mrf.mxu0
        %v1052 = vadd.f32 %v823, %v1051
        %1053 = vmatmul.bf16.gmra.mxu0 %v965
        %v1054 = vpop.f32.mrf.mxu0
        %v1055 = vadd.f32 %v826, %v1054
        %v1056 = vpop.f32.mrf.mxu0
        %v1057 = vadd.f32 %v828, %v1056
        %1058 = vdwg.mxu0
        %s1059 = sadd.s32 %s185, 1
        %s1060 = smul.u32 %s1059, 3
        %s1061 = smul.addr %s1060, 4
        %s1062 = scalar_lea.vmem %s182, %s1061
        %v1063 = vld [vmem:[%s1062] sm:$0xf]
        %v1064 = vld [vmem:[%s1062 + $0x4] sm:$0xf]
        %v1065 = vld [vmem:[%s1062 + $0xc] sm:$0xf]
        %v1066 = vld [vmem:[%s1062 + $0x10] sm:$0xf]
        %v1067 = vld [vmem:[%s1062 + $0x18] sm:$0xf]
        %v1068 = vld [vmem:[%s1062 + $0x1c] sm:$0xf]
        %v1069 = vld [vmem:[%s1062 + $0x24] sm:$0xf]
        %v1070 = vld [vmem:[%s1062 + $0x28] sm:$0xf]
        %v1071 = vld [vmem:[%s1062 + $0x30] sm:$0xf]
        %v1072 = vld [vmem:[%s1062 + $0x34] sm:$0xf]
        %v1073 = vld [vmem:[%s1062 + $0x3c] sm:$0xf]
        %v1074 = vld [vmem:[%s1062 + $0x40] sm:$0xf]
        %v1075 = vld [vmem:[%s1062 + $0x48] sm:$0xf]
        %v1076 = vld [vmem:[%s1062 + $0x4c] sm:$0xf]
        %v1077 = vld [vmem:[%s1062 + $0x54] sm:$0xf]
        %v1078 = vld [vmem:[%s1062 + $0x58] sm:$0xf]
        %v1079 = vld [vmem:[%s1062 + $0x60] sm:$0xf]
        %v1080 = vld [vmem:[%s1062 + $0x64] sm:$0xf]
        %v1081 = vld [vmem:[%s1062 + $0x6c] sm:$0xf]
        %v1082 = vld [vmem:[%s1062 + $0x70] sm:$0xf]
        %v1083 = vld [vmem:[%s1062 + $0x78] sm:$0xf]
        %v1084 = vld [vmem:[%s1062 + $0x7c] sm:$0xf]
        %v1085 = vld [vmem:[%s1062 + $0x84] sm:$0xf]
        %v1086 = vld [vmem:[%s1062 + $0x88] sm:$0xf]
        %v1087 = vld [vmem:[%s1062 + $0x90] sm:$0xf]
        %v1088 = vld [vmem:[%s1062 + $0x94] sm:$0xf]
        %v1089 = vld [vmem:[%s1062 + $0x9c] sm:$0xf]
        %v1090 = vld [vmem:[%s1062 + $0xa0] sm:$0xf]
        %v1091 = vld [vmem:[%s1062 + $0xa8] sm:$0xf]
        %v1092 = vld [vmem:[%s1062 + $0xac] sm:$0xf]
        %v1093 = vld [vmem:[%s1062 + $0xb4] sm:$0xf]
        %v1094 = vld [vmem:[%s1062 + $0xb8] sm:$0xf]
        %s1095 = scalar_lea.vmem %s1, 24
        %v1096 = vld [vmem:[%s1095] sm:$0xf]
        %v1097 = vld [vmem:[%s1095 + $0x4] sm:$0xf]
        %v1098 = vld [vmem:[%s1095 + $0x8] sm:$0xf]
        %v1131 = vunpack.c.l.b16 %v1063
        %v1132 = vunpack.c.l.b16 %v1064
        %v1133 = vunpack.c.l.b16 %v1065
        %v1134 = vunpack.c.l.b16 %v1066
        %v1135 = vunpack.c.l.b16 %v1067
        %v1136 = vunpack.c.l.b16 %v1068
        %v1137 = vunpack.c.l.b16 %v1069
        %v1138 = vunpack.c.l.b16 %v1070
        %v1139 = vunpack.c.l.b16 %v1071
        %v1140 = vunpack.c.l.b16 %v1072
        %v1141 = vunpack.c.l.b16 %v1073
        %v1142 = vunpack.c.l.b16 %v1074
        %v1143 = vunpack.c.l.b16 %v1075
        %v1144 = vunpack.c.l.b16 %v1076
        %v1145 = vunpack.c.l.b16 %v1077
        %v1146 = vunpack.c.l.b16 %v1078
        %v1147 = vunpack.c.l.b16 %v1079
        %v1148 = vunpack.c.l.b16 %v1080
        %v1149 = vunpack.c.l.b16 %v1081
        %v1150 = vunpack.c.l.b16 %v1082
        %v1151 = vunpack.c.l.b16 %v1083
        %v1152 = vunpack.c.l.b16 %v1084
        %v1153 = vunpack.c.l.b16 %v1085
        %v1154 = vunpack.c.l.b16 %v1086
        %v1155 = vunpack.c.l.b16 %v1087
        %v1156 = vunpack.c.l.b16 %v1088
        %v1157 = vunpack.c.l.b16 %v1089
        %v1158 = vunpack.c.l.b16 %v1090
        %v1159 = vunpack.c.l.b16 %v1091
        %v1160 = vunpack.c.l.b16 %v1092
        %v1161 = vunpack.c.l.b16 %v1093
        %v1162 = vunpack.c.l.b16 %v1094
        %v1163 = vpack.c.b16 %v1132, %v1131
        %v1164 = vpack.c.b16 %v1134, %v1133
        %v1165 = vpack.c.b16 %v1136, %v1135
        %v1166 = vpack.c.b16 %v1138, %v1137
        %v1167 = vpack.c.b16 %v1140, %v1139
        %v1168 = vpack.c.b16 %v1142, %v1141
        %v1169 = vpack.c.b16 %v1144, %v1143
        %v1170 = vpack.c.b16 %v1146, %v1145
        %v1171 = vpack.c.b16 %v1148, %v1147
        %v1172 = vpack.c.b16 %v1150, %v1149
        %v1173 = vpack.c.b16 %v1152, %v1151
        %v1174 = vpack.c.b16 %v1154, %v1153
        %v1175 = vpack.c.b16 %v1156, %v1155
        %v1176 = vpack.c.b16 %v1158, %v1157
        %v1177 = vpack.c.b16 %v1160, %v1159
        %v1178 = vpack.c.b16 %v1162, %v1161
        %v1182 = vunpack.c.l.b16 %v1096
        %v1183 = vunpack.c.l.b16 %v1097
        %v1184 = vunpack.c.l.b16 %v1098
        %v1185 = vpack.c.b16 %v1183, %v1182
        %v1186 = vpack.c.b16 %v1184, %v1184
        %v1189 = vsel %vm688, %v1163, 0
        %v1192 = vsel %vm688, %v1164, 0
        %v1195 = vsel %vm688, %v1165, 0
        %v1198 = vsel %vm688, %v1166, 0
        %v1201 = vsel %vm688, %v1167, 0
        %v1204 = vsel %vm688, %v1168, 0
        %v1207 = vsel %vm688, %v1169, 0
        %v1210 = vsel %vm688, %v1170, 0
        %v1213 = vsel %vm688, %v1171, 0
        %v1216 = vsel %vm688, %v1172, 0
        %v1219 = vsel %vm688, %v1173, 0
        %v1222 = vsel %vm688, %v1174, 0
        %v1225 = vsel %vm688, %v1175, 0
        %v1228 = vsel %vm688, %v1176, 0
        %v1231 = vsel %vm688, %v1177, 0
        %v1234 = vsel %vm688, %v1178, 0
        %v1237 = vsel %vm737, %v1186, 0
        %1239 = vmatpush.bf16.msra.mxu0 0
        %1240 = vmatpush.bf16.msra.mxu0 0
        %1241 = vmatpush.bf16.msra.mxu0 0
        %1242 = vmatpush.bf16.msra.mxu0 0
        %1243 = vmatpush.bf16.msra.mxu0 0
        %1244 = vmatpush.bf16.msra.mxu0 0
        %1245 = vmatpush.bf16.msra.mxu0 %v1237
        %1246 = vmatpush.bf16.msra.mxu0 %v1185
        %1247 = vmatmul.bf16.gmra.mxu0 %v1189
        %v1248 = vpop.f32.mrf.mxu0
        %v1249 = vadd.f32 0.0, %v1248
        %v1250 = vpop.f32.mrf.mxu0
        %v1251 = vadd.f32 0.0, %v1250
        %1252 = vmatmul.bf16.gmra.mxu0 %v1192
        %v1253 = vpop.f32.mrf.mxu0
        %v1254 = vadd.f32 0.0, %v1253
        %v1255 = vpop.f32.mrf.mxu0
        %v1256 = vadd.f32 0.0, %v1255
        %1257 = vmatmul.bf16.gmra.mxu0 %v1195
        %v1258 = vpop.f32.mrf.mxu0
        %v1259 = vadd.f32 0.0, %v1258
        %v1260 = vpop.f32.mrf.mxu0
        %v1261 = vadd.f32 0.0, %v1260
        %1262 = vmatmul.bf16.gmra.mxu0 %v1198
        %v1263 = vpop.f32.mrf.mxu0
        %v1264 = vadd.f32 0.0, %v1263
        %v1265 = vpop.f32.mrf.mxu0
        %v1266 = vadd.f32 0.0, %v1265
        %1267 = vmatmul.bf16.gmra.mxu0 %v1201
        %v1268 = vpop.f32.mrf.mxu0
        %v1269 = vadd.f32 0.0, %v1268
        %v1270 = vpop.f32.mrf.mxu0
        %v1271 = vadd.f32 0.0, %v1270
        %1272 = vmatmul.bf16.gmra.mxu0 %v1204
        %v1273 = vpop.f32.mrf.mxu0
        %v1274 = vadd.f32 0.0, %v1273
        %v1275 = vpop.f32.mrf.mxu0
        %v1276 = vadd.f32 0.0, %v1275
        %1277 = vmatmul.bf16.gmra.mxu0 %v1207
        %v1278 = vpop.f32.mrf.mxu0
        %v1279 = vadd.f32 0.0, %v1278
        %v1280 = vpop.f32.mrf.mxu0
        %v1281 = vadd.f32 0.0, %v1280
        %1282 = vmatmul.bf16.gmra.mxu0 %v1210
        %v1283 = vpop.f32.mrf.mxu0
        %v1284 = vadd.f32 0.0, %v1283
        %v1285 = vpop.f32.mrf.mxu0
        %v1286 = vadd.f32 0.0, %v1285
        %1287 = vmatmul.bf16.gmra.mxu0 %v1213
        %v1288 = vpop.f32.mrf.mxu0
        %v1289 = vadd.f32 0.0, %v1288
        %v1290 = vpop.f32.mrf.mxu0
        %v1291 = vadd.f32 0.0, %v1290
        %1292 = vmatmul.bf16.gmra.mxu0 %v1216
        %v1293 = vpop.f32.mrf.mxu0
        %v1294 = vadd.f32 0.0, %v1293
        %v1295 = vpop.f32.mrf.mxu0
        %v1296 = vadd.f32 0.0, %v1295
        %1297 = vmatmul.bf16.gmra.mxu0 %v1219
        %v1298 = vpop.f32.mrf.mxu0
        %v1299 = vadd.f32 0.0, %v1298
        %v1300 = vpop.f32.mrf.mxu0
        %v1301 = vadd.f32 0.0, %v1300
        %1302 = vmatmul.bf16.gmra.mxu0 %v1222
        %v1303 = vpop.f32.mrf.mxu0
        %v1304 = vadd.f32 0.0, %v1303
        %v1305 = vpop.f32.mrf.mxu0
        %v1306 = vadd.f32 0.0, %v1305
        %1307 = vmatmul.bf16.gmra.mxu0 %v1225
        %v1308 = vpop.f32.mrf.mxu0
        %v1309 = vadd.f32 0.0, %v1308
        %v1310 = vpop.f32.mrf.mxu0
        %v1311 = vadd.f32 0.0, %v1310
        %1312 = vmatmul.bf16.gmra.mxu0 %v1228
        %v1313 = vpop.f32.mrf.mxu0
        %v1314 = vadd.f32 0.0, %v1313
        %v1315 = vpop.f32.mrf.mxu0
        %v1316 = vadd.f32 0.0, %v1315
        %1317 = vmatmul.bf16.gmra.mxu0 %v1231
        %v1318 = vpop.f32.mrf.mxu0
        %v1319 = vadd.f32 0.0, %v1318
        %v1320 = vpop.f32.mrf.mxu0
        %v1321 = vadd.f32 0.0, %v1320
        %1322 = vmatmul.bf16.gmra.mxu0 %v1234
        %v1323 = vpop.f32.mrf.mxu0
        %v1324 = vadd.f32 0.0, %v1323
        %v1325 = vpop.f32.mrf.mxu0
        %v1326 = vadd.f32 0.0, %v1325
        %1327 = vdwg.mxu0
        %v1328 = vadd.f32 %v980, %v1249
        %v1329 = vadd.f32 %v982, %v1251
        %v1330 = vadd.f32 %v985, %v1254
        %v1331 = vadd.f32 %v987, %v1256
        %v1332 = vadd.f32 %v990, %v1259
        %v1333 = vadd.f32 %v992, %v1261
        %v1334 = vadd.f32 %v995, %v1264
        %v1335 = vadd.f32 %v997, %v1266
        %v1336 = vadd.f32 %v1000, %v1269
        %v1337 = vadd.f32 %v1002, %v1271
        %v1338 = vadd.f32 %v1005, %v1274
        %v1339 = vadd.f32 %v1007, %v1276
        %v1340 = vadd.f32 %v1010, %v1279
        %v1341 = vadd.f32 %v1012, %v1281
        %v1342 = vadd.f32 %v1015, %v1284
        %v1343 = vadd.f32 %v1017, %v1286
        %v1344 = vadd.f32 %v1020, %v1289
        %v1345 = vadd.f32 %v1022, %v1291
        %v1346 = vadd.f32 %v1025, %v1294
        %v1347 = vadd.f32 %v1027, %v1296
        %v1348 = vadd.f32 %v1030, %v1299
        %v1349 = vadd.f32 %v1032, %v1301
        %v1350 = vadd.f32 %v1035, %v1304
        %v1351 = vadd.f32 %v1037, %v1306
        %v1352 = vadd.f32 %v1040, %v1309
        %v1353 = vadd.f32 %v1042, %v1311
        %v1354 = vadd.f32 %v1045, %v1314
        %v1355 = vadd.f32 %v1047, %v1316
        %v1356 = vadd.f32 %v1050, %v1319
        %v1357 = vadd.f32 %v1052, %v1321
        %v1358 = vadd.f32 %v1055, %v1324
        %v1359 = vadd.f32 %v1057, %v1326
        %v1360 = vld [vmem:[%s1062] sm:$0xf]
        %v1361 = vld [vmem:[%s1062 + $0x4] sm:$0xf]
        %v1362 = vld [vmem:[%s1062 + $0x8] sm:$0x1]
        %v1363 = vld [vmem:[%s1062 + $0xc] sm:$0xf]
        %v1364 = vld [vmem:[%s1062 + $0x10] sm:$0xf]
        %v1365 = vld [vmem:[%s1062 + $0x14] sm:$0x1]
        %v1366 = vld [vmem:[%s1062 + $0x18] sm:$0xf]
        %v1367 = vld [vmem:[%s1062 + $0x1c] sm:$0xf]
        %v1368 = vld [vmem:[%s1062 + $0x20] sm:$0x1]
        %v1369 = vld [vmem:[%s1062 + $0x24] sm:$0xf]
        %v1370 = vld [vmem:[%s1062 + $0x28] sm:$0xf]
        %v1371 = vld [vmem:[%s1062 + $0x2c] sm:$0x1]
        %v1372 = vld [vmem:[%s1062 + $0x30] sm:$0xf]
        %v1373 = vld [vmem:[%s1062 + $0x34] sm:$0xf]
        %v1374 = vld [vmem:[%s1062 + $0x38] sm:$0x1]
        %v1375 = vld [vmem:[%s1062 + $0x3c] sm:$0xf]
        %v1376 = vld [vmem:[%s1062 + $0x40] sm:$0xf]
        %v1377 = vld [vmem:[%s1062 + $0x44] sm:$0x1]
        %v1378 = vld [vmem:[%s1062 + $0x48] sm:$0xf]
        %v1379 = vld [vmem:[%s1062 + $0x4c] sm:$0xf]
        %v1380 = vld [vmem:[%s1062 + $0x50] sm:$0x1]
        %v1381 = vld [vmem:[%s1062 + $0x54] sm:$0xf]
        %v1382 = vld [vmem:[%s1062 + $0x58] sm:$0xf]
        %v1383 = vld [vmem:[%s1062 + $0x5c] sm:$0x1]
        %v1384 = vld [vmem:[%s1062 + $0x60] sm:$0xf]
        %v1385 = vld [vmem:[%s1062 + $0x64] sm:$0xf]
        %v1386 = vld [vmem:[%s1062 + $0x68] sm:$0x1]
        %v1387 = vld [vmem:[%s1062 + $0x6c] sm:$0xf]
        %v1388 = vld [vmem:[%s1062 + $0x70] sm:$0xf]
        %v1389 = vld [vmem:[%s1062 + $0x74] sm:$0x1]
        %v1390 = vld [vmem:[%s1062 + $0x78] sm:$0xf]
        %v1391 = vld [vmem:[%s1062 + $0x7c] sm:$0xf]
        %v1392 = vld [vmem:[%s1062 + $0x80] sm:$0x1]
        %v1393 = vld [vmem:[%s1062 + $0x84] sm:$0xf]
        %v1394 = vld [vmem:[%s1062 + $0x88] sm:$0xf]
        %v1395 = vld [vmem:[%s1062 + $0x8c] sm:$0x1]
        %v1396 = vld [vmem:[%s1062 + $0x90] sm:$0xf]
        %v1397 = vld [vmem:[%s1062 + $0x94] sm:$0xf]
        %v1398 = vld [vmem:[%s1062 + $0x98] sm:$0x1]
        %v1399 = vld [vmem:[%s1062 + $0x9c] sm:$0xf]
        %v1400 = vld [vmem:[%s1062 + $0xa0] sm:$0xf]
        %v1401 = vld [vmem:[%s1062 + $0xa4] sm:$0x1]
        %v1402 = vld [vmem:[%s1062 + $0xa8] sm:$0xf]
        %v1403 = vld [vmem:[%s1062 + $0xac] sm:$0xf]
        %v1404 = vld [vmem:[%s1062 + $0xb0] sm:$0x1]
        %v1405 = vld [vmem:[%s1062 + $0xb4] sm:$0xf]
        %v1406 = vld [vmem:[%s1062 + $0xb8] sm:$0xf]
        %v1407 = vld [vmem:[%s1062 + $0xbc] sm:$0x1]
        %v1409 = vshrl.u32 %v1360, 16
        %v1411 = vrot.slane %v1409, 4
        %v1412 = vshll.u32 %v1360, 16
        %v1414 = vrot.slane %v1412, 5
        %v1415 = vor.u32 %v1411, %v1414
        %v1416 = vrot.slane %v1415, 4
        %v1418 = vshll.u32 %v1361, 16
        %v1420 = vrot.slane %v1418, 5
        %v1421 = vsel %vm242, %v1416, %v1420
        %v1422 = vshrl.u32 %v1361, 16
        %v1424 = vrot.slane %v1422, 4
        %v1425 = vor.u32 %v1424, %v1420
        %v1426 = vrot.slane %v1425, 4
        %v1428 = vshll.u32 %v1362, 16
        %v1430 = vrot.slane %v1428, 5
        %v1431 = vsel %vm242, %v1426, %v1430
        %v1433 = vshrl.u32 %v1363, 16
        %v1435 = vrot.slane %v1433, 4
        %v1436 = vshll.u32 %v1363, 16
        %v1438 = vrot.slane %v1436, 5
        %v1439 = vor.u32 %v1435, %v1438
        %v1440 = vrot.slane %v1439, 4
        %v1442 = vshll.u32 %v1364, 16
        %v1444 = vrot.slane %v1442, 5
        %v1445 = vsel %vm242, %v1440, %v1444
        %v1446 = vshrl.u32 %v1364, 16
        %v1448 = vrot.slane %v1446, 4
        %v1449 = vor.u32 %v1448, %v1444
        %v1450 = vrot.slane %v1449, 4
        %v1452 = vshll.u32 %v1365, 16
        %v1454 = vrot.slane %v1452, 5
        %v1455 = vsel %vm242, %v1450, %v1454
        %v1457 = vshrl.u32 %v1366, 16
        %v1459 = vrot.slane %v1457, 4
        %v1460 = vshll.u32 %v1366, 16
        %v1462 = vrot.slane %v1460, 5
        %v1463 = vor.u32 %v1459, %v1462
        %v1464 = vrot.slane %v1463, 4
        %v1466 = vshll.u32 %v1367, 16
        %v1468 = vrot.slane %v1466, 5
        %v1469 = vsel %vm242, %v1464, %v1468
        %v1470 = vshrl.u32 %v1367, 16
        %v1472 = vrot.slane %v1470, 4
        %v1473 = vor.u32 %v1472, %v1468
        %v1474 = vrot.slane %v1473, 4
        %v1476 = vshll.u32 %v1368, 16
        %v1478 = vrot.slane %v1476, 5
        %v1479 = vsel %vm242, %v1474, %v1478
        %v1481 = vshrl.u32 %v1369, 16
        %v1483 = vrot.slane %v1481, 4
        %v1484 = vshll.u32 %v1369, 16
        %v1486 = vrot.slane %v1484, 5
        %v1487 = vor.u32 %v1483, %v1486
        %v1488 = vrot.slane %v1487, 4
        %v1490 = vshll.u32 %v1370, 16
        %v1492 = vrot.slane %v1490, 5
        %v1493 = vsel %vm242, %v1488, %v1492
        %v1494 = vshrl.u32 %v1370, 16
        %v1496 = vrot.slane %v1494, 4
        %v1497 = vor.u32 %v1496, %v1492
        %v1498 = vrot.slane %v1497, 4
        %v1500 = vshll.u32 %v1371, 16
        %v1502 = vrot.slane %v1500, 5
        %v1503 = vsel %vm242, %v1498, %v1502
        %v1505 = vshrl.u32 %v1372, 16
        %v1507 = vrot.slane %v1505, 4
        %v1508 = vshll.u32 %v1372, 16
        %v1510 = vrot.slane %v1508, 5
        %v1511 = vor.u32 %v1507, %v1510
        %v1512 = vrot.slane %v1511, 4
        %v1514 = vshll.u32 %v1373, 16
        %v1516 = vrot.slane %v1514, 5
        %v1517 = vsel %vm242, %v1512, %v1516
        %v1518 = vshrl.u32 %v1373, 16
        %v1520 = vrot.slane %v1518, 4
        %v1521 = vor.u32 %v1520, %v1516
        %v1522 = vrot.slane %v1521, 4
        %v1524 = vshll.u32 %v1374, 16
        %v1526 = vrot.slane %v1524, 5
        %v1527 = vsel %vm242, %v1522, %v1526
        %v1529 = vshrl.u32 %v1375, 16
        %v1531 = vrot.slane %v1529, 4
        %v1532 = vshll.u32 %v1375, 16
        %v1534 = vrot.slane %v1532, 5
        %v1535 = vor.u32 %v1531, %v1534
        %v1536 = vrot.slane %v1535, 4
        %v1538 = vshll.u32 %v1376, 16
        %v1540 = vrot.slane %v1538, 5
        %v1541 = vsel %vm242, %v1536, %v1540
        %v1542 = vshrl.u32 %v1376, 16
        %v1544 = vrot.slane %v1542, 4
        %v1545 = vor.u32 %v1544, %v1540
        %v1546 = vrot.slane %v1545, 4
        %v1548 = vshll.u32 %v1377, 16
        %v1550 = vrot.slane %v1548, 5
        %v1551 = vsel %vm242, %v1546, %v1550
        %v1553 = vshrl.u32 %v1378, 16
        %v1555 = vrot.slane %v1553, 4
        %v1556 = vshll.u32 %v1378, 16
        %v1558 = vrot.slane %v1556, 5
        %v1559 = vor.u32 %v1555, %v1558
        %v1560 = vrot.slane %v1559, 4
        %v1562 = vshll.u32 %v1379, 16
        %v1564 = vrot.slane %v1562, 5
        %v1565 = vsel %vm242, %v1560, %v1564
        %v1566 = vshrl.u32 %v1379, 16
        %v1568 = vrot.slane %v1566, 4
        %v1569 = vor.u32 %v1568, %v1564
        %v1570 = vrot.slane %v1569, 4
        %v1572 = vshll.u32 %v1380, 16
        %v1574 = vrot.slane %v1572, 5
        %v1575 = vsel %vm242, %v1570, %v1574
        %v1577 = vshrl.u32 %v1381, 16
        %v1579 = vrot.slane %v1577, 4
        %v1580 = vshll.u32 %v1381, 16
        %v1582 = vrot.slane %v1580, 5
        %v1583 = vor.u32 %v1579, %v1582
        %v1584 = vrot.slane %v1583, 4
        %v1586 = vshll.u32 %v1382, 16
        %v1588 = vrot.slane %v1586, 5
        %v1589 = vsel %vm242, %v1584, %v1588
        %v1590 = vshrl.u32 %v1382, 16
        %v1592 = vrot.slane %v1590, 4
        %v1593 = vor.u32 %v1592, %v1588
        %v1594 = vrot.slane %v1593, 4
        %v1596 = vshll.u32 %v1383, 16
        %v1598 = vrot.slane %v1596, 5
        %v1599 = vsel %vm242, %v1594, %v1598
        %v1601 = vshrl.u32 %v1384, 16
        %v1603 = vrot.slane %v1601, 4
        %v1604 = vshll.u32 %v1384, 16
        %v1606 = vrot.slane %v1604, 5
        %v1607 = vor.u32 %v1603, %v1606
        %v1608 = vrot.slane %v1607, 4
        %v1610 = vshll.u32 %v1385, 16
        %v1612 = vrot.slane %v1610, 5
        %v1613 = vsel %vm242, %v1608, %v1612
        %v1614 = vshrl.u32 %v1385, 16
        %v1616 = vrot.slane %v1614, 4
        %v1617 = vor.u32 %v1616, %v1612
        %v1618 = vrot.slane %v1617, 4
        %v1620 = vshll.u32 %v1386, 16
        %v1622 = vrot.slane %v1620, 5
        %v1623 = vsel %vm242, %v1618, %v1622
        %v1625 = vshrl.u32 %v1387, 16
        %v1627 = vrot.slane %v1625, 4
        %v1628 = vshll.u32 %v1387, 16
        %v1630 = vrot.slane %v1628, 5
        %v1631 = vor.u32 %v1627, %v1630
        %v1632 = vrot.slane %v1631, 4
        %v1634 = vshll.u32 %v1388, 16
        %v1636 = vrot.slane %v1634, 5
        %v1637 = vsel %vm242, %v1632, %v1636
        %v1638 = vshrl.u32 %v1388, 16
        %v1640 = vrot.slane %v1638, 4
        %v1641 = vor.u32 %v1640, %v1636
        %v1642 = vrot.slane %v1641, 4
        %v1644 = vshll.u32 %v1389, 16
        %v1646 = vrot.slane %v1644, 5
        %v1647 = vsel %vm242, %v1642, %v1646
        %v1649 = vshrl.u32 %v1390, 16
        %v1651 = vrot.slane %v1649, 4
        %v1652 = vshll.u32 %v1390, 16
        %v1654 = vrot.slane %v1652, 5
        %v1655 = vor.u32 %v1651, %v1654
        %v1656 = vrot.slane %v1655, 4
        %v1658 = vshll.u32 %v1391, 16
        %v1660 = vrot.slane %v1658, 5
        %v1661 = vsel %vm242, %v1656, %v1660
        %v1662 = vshrl.u32 %v1391, 16
        %v1664 = vrot.slane %v1662, 4
        %v1665 = vor.u32 %v1664, %v1660
        %v1666 = vrot.slane %v1665, 4
        %v1668 = vshll.u32 %v1392, 16
        %v1670 = vrot.slane %v1668, 5
        %v1671 = vsel %vm242, %v1666, %v1670
        %v1673 = vshrl.u32 %v1393, 16
        %v1675 = vrot.slane %v1673, 4
        %v1676 = vshll.u32 %v1393, 16
        %v1678 = vrot.slane %v1676, 5
        %v1679 = vor.u32 %v1675, %v1678
        %v1680 = vrot.slane %v1679, 4
        %v1682 = vshll.u32 %v1394, 16
        %v1684 = vrot.slane %v1682, 5
        %v1685 = vsel %vm242, %v1680, %v1684
        %v1686 = vshrl.u32 %v1394, 16
        %v1688 = vrot.slane %v1686, 4
        %v1689 = vor.u32 %v1688, %v1684
        %v1690 = vrot.slane %v1689, 4
        %v1692 = vshll.u32 %v1395, 16
        %v1694 = vrot.slane %v1692, 5
        %v1695 = vsel %vm242, %v1690, %v1694
        %v1697 = vshrl.u32 %v1396, 16
        %v1699 = vrot.slane %v1697, 4
        %v1700 = vshll.u32 %v1396, 16
        %v1702 = vrot.slane %v1700, 5
        %v1703 = vor.u32 %v1699, %v1702
        %v1704 = vrot.slane %v1703, 4
        %v1706 = vshll.u32 %v1397, 16
        %v1708 = vrot.slane %v1706, 5
        %v1709 = vsel %vm242, %v1704, %v1708
        %v1710 = vshrl.u32 %v1397, 16
        %v1712 = vrot.slane %v1710, 4
        %v1713 = vor.u32 %v1712, %v1708
        %v1714 = vrot.slane %v1713, 4
        %v1716 = vshll.u32 %v1398, 16
        %v1718 = vrot.slane %v1716, 5
        %v1719 = vsel %vm242, %v1714, %v1718
        %v1721 = vshrl.u32 %v1399, 16
        %v1723 = vrot.slane %v1721, 4
        %v1724 = vshll.u32 %v1399, 16
        %v1726 = vrot.slane %v1724, 5
        %v1727 = vor.u32 %v1723, %v1726
        %v1728 = vrot.slane %v1727, 4
        %v1730 = vshll.u32 %v1400, 16
        %v1732 = vrot.slane %v1730, 5
        %v1733 = vsel %vm242, %v1728, %v1732
        %v1734 = vshrl.u32 %v1400, 16
        %v1736 = vrot.slane %v1734, 4
        %v1737 = vor.u32 %v1736, %v1732
        %v1738 = vrot.slane %v1737, 4
        %v1740 = vshll.u32 %v1401, 16
        %v1742 = vrot.slane %v1740, 5
        %v1743 = vsel %vm242, %v1738, %v1742
        %v1745 = vshrl.u32 %v1402, 16
        %v1747 = vrot.slane %v1745, 4
        %v1748 = vshll.u32 %v1402, 16
        %v1750 = vrot.slane %v1748, 5
        %v1751 = vor.u32 %v1747, %v1750
        %v1752 = vrot.slane %v1751, 4
        %v1754 = vshll.u32 %v1403, 16
        %v1756 = vrot.slane %v1754, 5
        %v1757 = vsel %vm242, %v1752, %v1756
        %v1758 = vshrl.u32 %v1403, 16
        %v1760 = vrot.slane %v1758, 4
        %v1761 = vor.u32 %v1760, %v1756
        %v1762 = vrot.slane %v1761, 4
        %v1764 = vshll.u32 %v1404, 16
        %v1766 = vrot.slane %v1764, 5
        %v1767 = vsel %vm242, %v1762, %v1766
        %v1769 = vshrl.u32 %v1405, 16
        %v1771 = vrot.slane %v1769, 4
        %v1772 = vshll.u32 %v1405, 16
        %v1774 = vrot.slane %v1772, 5
        %v1775 = vor.u32 %v1771, %v1774
        %v1776 = vrot.slane %v1775, 4
        %v1778 = vshll.u32 %v1406, 16
        %v1780 = vrot.slane %v1778, 5
        %v1781 = vsel %vm242, %v1776, %v1780
        %v1782 = vshrl.u32 %v1406, 16
        %v1784 = vrot.slane %v1782, 4
        %v1785 = vor.u32 %v1784, %v1780
        %v1786 = vrot.slane %v1785, 4
        %v1788 = vshll.u32 %v1407, 16
        %v1790 = vrot.slane %v1788, 5
        %v1791 = vsel %vm242, %v1786, %v1790
        %s1792 = scalar_lea.vmem %s1, 36
        %v1793 = vld [vmem:[%s1792] sm:$0xf]
        %v1794 = vld [vmem:[%s1792 + $0x4] sm:$0xf]
        %v1795 = vld [vmem:[%s1792 + $0x8] sm:$0xf]
        %v1796 = vunpack.c.l.b16 %v1421
        %v1797 = vunpack.c.l.b16 %v1431
        %v1798 = vunpack.c.l.b16 %v1445
        %v1799 = vunpack.c.l.b16 %v1455
        %v1800 = vunpack.c.l.b16 %v1469
        %v1801 = vunpack.c.l.b16 %v1479
        %v1802 = vunpack.c.l.b16 %v1493
        %v1803 = vunpack.c.l.b16 %v1503
        %v1804 = vunpack.c.l.b16 %v1517
        %v1805 = vunpack.c.l.b16 %v1527
        %v1806 = vunpack.c.l.b16 %v1541
        %v1807 = vunpack.c.l.b16 %v1551
        %v1808 = vunpack.c.l.b16 %v1565
        %v1809 = vunpack.c.l.b16 %v1575
        %v1810 = vunpack.c.l.b16 %v1589
        %v1811 = vunpack.c.l.b16 %v1599
        %v1812 = vunpack.c.l.b16 %v1613
        %v1813 = vunpack.c.l.b16 %v1623
        %v1814 = vunpack.c.l.b16 %v1637
        %v1815 = vunpack.c.l.b16 %v1647
        %v1816 = vunpack.c.l.b16 %v1661
        %v1817 = vunpack.c.l.b16 %v1671
        %v1818 = vunpack.c.l.b16 %v1685
        %v1819 = vunpack.c.l.b16 %v1695
        %v1820 = vunpack.c.l.b16 %v1709
        %v1821 = vunpack.c.l.b16 %v1719
        %v1822 = vunpack.c.l.b16 %v1733
        %v1823 = vunpack.c.l.b16 %v1743
        %v1824 = vunpack.c.l.b16 %v1757
        %v1825 = vunpack.c.l.b16 %v1767
        %v1826 = vunpack.c.l.b16 %v1781
        %v1827 = vunpack.c.l.b16 %v1791
        %v1828 = vpack.c.b16 %v1797, %v1796
        %v1829 = vpack.c.b16 %v1799, %v1798
        %v1830 = vpack.c.b16 %v1801, %v1800
        %v1831 = vpack.c.b16 %v1803, %v1802
        %v1832 = vpack.c.b16 %v1805, %v1804
        %v1833 = vpack.c.b16 %v1807, %v1806
        %v1834 = vpack.c.b16 %v1809, %v1808
        %v1835 = vpack.c.b16 %v1811, %v1810
        %v1836 = vpack.c.b16 %v1813, %v1812
        %v1837 = vpack.c.b16 %v1815, %v1814
        %v1838 = vpack.c.b16 %v1817, %v1816
        %v1839 = vpack.c.b16 %v1819, %v1818
        %v1840 = vpack.c.b16 %v1821, %v1820
        %v1841 = vpack.c.b16 %v1823, %v1822
        %v1842 = vpack.c.b16 %v1825, %v1824
        %v1843 = vpack.c.b16 %v1827, %v1826
        %v1847 = vunpack.c.l.b16 %v1793
        %v1848 = vunpack.c.l.b16 %v1794
        %v1849 = vunpack.c.l.b16 %v1795
        %v1850 = vpack.c.b16 %v1848, %v1847
        %v1851 = vpack.c.b16 %v1849, %v1849
        %v1854 = vsel %vm688, %v1828, 0
        %v1857 = vsel %vm688, %v1829, 0
        %v1860 = vsel %vm688, %v1830, 0
        %v1863 = vsel %vm688, %v1831, 0
        %v1866 = vsel %vm688, %v1832, 0
        %v1869 = vsel %vm688, %v1833, 0
        %v1872 = vsel %vm688, %v1834, 0
        %v1875 = vsel %vm688, %v1835, 0
        %v1878 = vsel %vm688, %v1836, 0
        %v1881 = vsel %vm688, %v1837, 0
        %v1884 = vsel %vm688, %v1838, 0
        %v1887 = vsel %vm688, %v1839, 0
        %v1890 = vsel %vm688, %v1840, 0
        %v1893 = vsel %vm688, %v1841, 0
        %v1896 = vsel %vm688, %v1842, 0
        %v1899 = vsel %vm688, %v1843, 0
        %v1902 = vsel %vm737, %v1851, 0
        %1904 = vmatpush.bf16.msra.mxu0 0
        %1905 = vmatpush.bf16.msra.mxu0 0
        %1906 = vmatpush.bf16.msra.mxu0 0
        %1907 = vmatpush.bf16.msra.mxu0 0
        %1908 = vmatpush.bf16.msra.mxu0 0
        %1909 = vmatpush.bf16.msra.mxu0 0
        %1910 = vmatpush.bf16.msra.mxu0 %v1902
        %1911 = vmatpush.bf16.msra.mxu0 %v1850
        %1912 = vmatmul.bf16.gmra.mxu0 %v1854
        %v1913 = vpop.f32.mrf.mxu0
        %v1914 = vadd.f32 0.0, %v1913
        %v1915 = vpop.f32.mrf.mxu0
        %v1916 = vadd.f32 0.0, %v1915
        %1917 = vmatmul.bf16.gmra.mxu0 %v1857
        %v1918 = vpop.f32.mrf.mxu0
        %v1919 = vadd.f32 0.0, %v1918
        %v1920 = vpop.f32.mrf.mxu0
        %v1921 = vadd.f32 0.0, %v1920
        %1922 = vmatmul.bf16.gmra.mxu0 %v1860
        %v1923 = vpop.f32.mrf.mxu0
        %v1924 = vadd.f32 0.0, %v1923
        %v1925 = vpop.f32.mrf.mxu0
        %v1926 = vadd.f32 0.0, %v1925
        %1927 = vmatmul.bf16.gmra.mxu0 %v1863
        %v1928 = vpop.f32.mrf.mxu0
        %v1929 = vadd.f32 0.0, %v1928
        %v1930 = vpop.f32.mrf.mxu0
        %v1931 = vadd.f32 0.0, %v1930
        %1932 = vmatmul.bf16.gmra.mxu0 %v1866
        %v1933 = vpop.f32.mrf.mxu0
        %v1934 = vadd.f32 0.0, %v1933
        %v1935 = vpop.f32.mrf.mxu0
        %v1936 = vadd.f32 0.0, %v1935
        %1937 = vmatmul.bf16.gmra.mxu0 %v1869
        %v1938 = vpop.f32.mrf.mxu0
        %v1939 = vadd.f32 0.0, %v1938
        %v1940 = vpop.f32.mrf.mxu0
        %v1941 = vadd.f32 0.0, %v1940
        %1942 = vmatmul.bf16.gmra.mxu0 %v1872
        %v1943 = vpop.f32.mrf.mxu0
        %v1944 = vadd.f32 0.0, %v1943
        %v1945 = vpop.f32.mrf.mxu0
        %v1946 = vadd.f32 0.0, %v1945
        %1947 = vmatmul.bf16.gmra.mxu0 %v1875
        %v1948 = vpop.f32.mrf.mxu0
        %v1949 = vadd.f32 0.0, %v1948
        %v1950 = vpop.f32.mrf.mxu0
        %v1951 = vadd.f32 0.0, %v1950
        %1952 = vmatmul.bf16.gmra.mxu0 %v1878
        %v1953 = vpop.f32.mrf.mxu0
        %v1954 = vadd.f32 0.0, %v1953
        %v1955 = vpop.f32.mrf.mxu0
        %v1956 = vadd.f32 0.0, %v1955
        %1957 = vmatmul.bf16.gmra.mxu0 %v1881
        %v1958 = vpop.f32.mrf.mxu0
        %v1959 = vadd.f32 0.0, %v1958
        %v1960 = vpop.f32.mrf.mxu0
        %v1961 = vadd.f32 0.0, %v1960
        %1962 = vmatmul.bf16.gmra.mxu0 %v1884
        %v1963 = vpop.f32.mrf.mxu0
        %v1964 = vadd.f32 0.0, %v1963
        %v1965 = vpop.f32.mrf.mxu0
        %v1966 = vadd.f32 0.0, %v1965
        %1967 = vmatmul.bf16.gmra.mxu0 %v1887
        %v1968 = vpop.f32.mrf.mxu0
        %v1969 = vadd.f32 0.0, %v1968
        %v1970 = vpop.f32.mrf.mxu0
        %v1971 = vadd.f32 0.0, %v1970
        %1972 = vmatmul.bf16.gmra.mxu0 %v1890
        %v1973 = vpop.f32.mrf.mxu0
        %v1974 = vadd.f32 0.0, %v1973
        %v1975 = vpop.f32.mrf.mxu0
        %v1976 = vadd.f32 0.0, %v1975
        %1977 = vmatmul.bf16.gmra.mxu0 %v1893
        %v1978 = vpop.f32.mrf.mxu0
        %v1979 = vadd.f32 0.0, %v1978
        %v1980 = vpop.f32.mrf.mxu0
        %v1981 = vadd.f32 0.0, %v1980
        %1982 = vmatmul.bf16.gmra.mxu0 %v1896
        %v1983 = vpop.f32.mrf.mxu0
        %v1984 = vadd.f32 0.0, %v1983
        %v1985 = vpop.f32.mrf.mxu0
        %v1986 = vadd.f32 0.0, %v1985
        %1987 = vmatmul.bf16.gmra.mxu0 %v1899
        %v1988 = vpop.f32.mrf.mxu0
        %v1989 = vadd.f32 0.0, %v1988
        %v1990 = vpop.f32.mrf.mxu0
        %v1991 = vadd.f32 0.0, %v1990
        %1992 = vdwg.mxu0
        %v1993 = vadd.f32 %v1328, %v1914
        %v1994 = vadd.f32 %v1329, %v1916
        %v1995 = vadd.f32 %v1330, %v1919
        %v1996 = vadd.f32 %v1331, %v1921
        %v1997 = vadd.f32 %v1332, %v1924
        %v1998 = vadd.f32 %v1333, %v1926
        %v1999 = vadd.f32 %v1334, %v1929
        %v2000 = vadd.f32 %v1335, %v1931
        %v2001 = vadd.f32 %v1336, %v1934
        %v2002 = vadd.f32 %v1337, %v1936
        %v2003 = vadd.f32 %v1338, %v1939
        %v2004 = vadd.f32 %v1339, %v1941
        %v2005 = vadd.f32 %v1340, %v1944
        %v2006 = vadd.f32 %v1341, %v1946
        %v2007 = vadd.f32 %v1342, %v1949
        %v2008 = vadd.f32 %v1343, %v1951
        %v2009 = vadd.f32 %v1344, %v1954
        %v2010 = vadd.f32 %v1345, %v1956
        %v2011 = vadd.f32 %v1346, %v1959
        %v2012 = vadd.f32 %v1347, %v1961
        %v2013 = vadd.f32 %v1348, %v1964
        %v2014 = vadd.f32 %v1349, %v1966
        %v2015 = vadd.f32 %v1350, %v1969
        %v2016 = vadd.f32 %v1351, %v1971
        %v2017 = vadd.f32 %v1352, %v1974
        %v2018 = vadd.f32 %v1353, %v1976
        %v2019 = vadd.f32 %v1354, %v1979
        %v2020 = vadd.f32 %v1355, %v1981
        %v2021 = vadd.f32 %v1356, %v1984
        %v2022 = vadd.f32 %v1357, %v1986
        %v2023 = vadd.f32 %v1358, %v1989
        %v2024 = vadd.f32 %v1359, %v1991
        %v2025 = vld [vmem:[%s2] sm:$0x1]
        %v2027 = vperm.slane %v2025, 0
        %v2029 = vadd.f32 %v1993, %v2027
        %v2030 = vadd.f32 %v1994, %v2027
        %v2031 = vadd.f32 %v1995, %v2027
        %v2032 = vadd.f32 %v1996, %v2027
        %v2033 = vadd.f32 %v1997, %v2027
        %v2034 = vadd.f32 %v1998, %v2027
        %v2035 = vadd.f32 %v1999, %v2027
        %v2036 = vadd.f32 %v2000, %v2027
        %v2037 = vadd.f32 %v2001, %v2027
        %v2038 = vadd.f32 %v2002, %v2027
        %v2039 = vadd.f32 %v2003, %v2027
        %v2040 = vadd.f32 %v2004, %v2027
        %v2041 = vadd.f32 %v2005, %v2027
        %v2042 = vadd.f32 %v2006, %v2027
        %v2043 = vadd.f32 %v2007, %v2027
        %v2044 = vadd.f32 %v2008, %v2027
        %v2045 = vadd.f32 %v2009, %v2027
        %v2046 = vadd.f32 %v2010, %v2027
        %v2047 = vadd.f32 %v2011, %v2027
        %v2048 = vadd.f32 %v2012, %v2027
        %v2049 = vadd.f32 %v2013, %v2027
        %v2050 = vadd.f32 %v2014, %v2027
        %v2051 = vadd.f32 %v2015, %v2027
        %v2052 = vadd.f32 %v2016, %v2027
        %v2053 = vadd.f32 %v2017, %v2027
        %v2054 = vadd.f32 %v2018, %v2027
        %v2055 = vadd.f32 %v2019, %v2027
        %v2056 = vadd.f32 %v2020, %v2027
        %v2057 = vadd.f32 %v2021, %v2027
        %v2058 = vadd.f32 %v2022, %v2027
        %v2059 = vadd.f32 %v2023, %v2027
        %v2060 = vadd.f32 %v2024, %v2027
        %v2061 = vmax.f32 %v2029, 0.0
        %v2062 = vmax.f32 %v2030, 0.0
        %v2063 = vmax.f32 %v2031, 0.0
        %v2064 = vmax.f32 %v2032, 0.0
        %v2065 = vmax.f32 %v2033, 0.0
        %v2066 = vmax.f32 %v2034, 0.0
        %v2067 = vmax.f32 %v2035, 0.0
        %v2068 = vmax.f32 %v2036, 0.0
        %v2069 = vmax.f32 %v2037, 0.0
        %v2070 = vmax.f32 %v2038, 0.0
        %v2071 = vmax.f32 %v2039, 0.0
        %v2072 = vmax.f32 %v2040, 0.0
        %v2073 = vmax.f32 %v2041, 0.0
        %v2074 = vmax.f32 %v2042, 0.0
        %v2075 = vmax.f32 %v2043, 0.0
        %v2076 = vmax.f32 %v2044, 0.0
        %v2077 = vmax.f32 %v2045, 0.0
        %v2078 = vmax.f32 %v2046, 0.0
        %v2079 = vmax.f32 %v2047, 0.0
        %v2080 = vmax.f32 %v2048, 0.0
        %v2081 = vmax.f32 %v2049, 0.0
        %v2082 = vmax.f32 %v2050, 0.0
        %v2083 = vmax.f32 %v2051, 0.0
        %v2084 = vmax.f32 %v2052, 0.0
        %v2085 = vmax.f32 %v2053, 0.0
        %v2086 = vmax.f32 %v2054, 0.0
        %v2087 = vmax.f32 %v2055, 0.0
        %v2088 = vmax.f32 %v2056, 0.0
        %v2089 = vmax.f32 %v2057, 0.0
        %v2090 = vmax.f32 %v2058, 0.0
        %v2091 = vmax.f32 %v2059, 0.0
        %v2092 = vmax.f32 %v2060, 0.0
        %v2093 = vpack.c.bf16 %v2061, %v2061
        %v2094 = vpack.c.bf16 %v2062, %v2062
        %v2095 = vpack.c.bf16 %v2063, %v2063
        %v2096 = vpack.c.bf16 %v2064, %v2064
        %v2097 = vpack.c.bf16 %v2065, %v2065
        %v2098 = vpack.c.bf16 %v2066, %v2066
        %v2099 = vpack.c.bf16 %v2067, %v2067
        %v2100 = vpack.c.bf16 %v2068, %v2068
        %v2101 = vpack.c.bf16 %v2069, %v2069
        %v2102 = vpack.c.bf16 %v2070, %v2070
        %v2103 = vpack.c.bf16 %v2071, %v2071
        %v2104 = vpack.c.bf16 %v2072, %v2072
        %v2105 = vpack.c.bf16 %v2073, %v2073
        %v2106 = vpack.c.bf16 %v2074, %v2074
        %v2107 = vpack.c.bf16 %v2075, %v2075
        %v2108 = vpack.c.bf16 %v2076, %v2076
        %v2109 = vpack.c.bf16 %v2077, %v2077
        %v2110 = vpack.c.bf16 %v2078, %v2078
        %v2111 = vpack.c.bf16 %v2079, %v2079
        %v2112 = vpack.c.bf16 %v2080, %v2080
        %v2113 = vpack.c.bf16 %v2081, %v2081
        %v2114 = vpack.c.bf16 %v2082, %v2082
        %v2115 = vpack.c.bf16 %v2083, %v2083
        %v2116 = vpack.c.bf16 %v2084, %v2084
        %v2117 = vpack.c.bf16 %v2085, %v2085
        %v2118 = vpack.c.bf16 %v2086, %v2086
        %v2119 = vpack.c.bf16 %v2087, %v2087
        %v2120 = vpack.c.bf16 %v2088, %v2088
        %v2121 = vpack.c.bf16 %v2089, %v2089
        %v2122 = vpack.c.bf16 %v2090, %v2090
        %v2123 = vpack.c.bf16 %v2091, %v2091
        %v2124 = vpack.c.bf16 %v2092, %v2092
        %vm2125 = vcmask 519168
        %2126 = vst.msk [vmem:[%s177] sm:$0xf] %vm2125, %v2093
        %2127 = vst.msk [vmem:[%s177 + $0x4] sm:$0xf] %vm2125, %v2094
        %2128 = vst.msk [vmem:[%s177 + $0x8] sm:$0xf] %vm2125, %v2095
        %2129 = vst.msk [vmem:[%s177 + $0xc] sm:$0xf] %vm2125, %v2096
        %2130 = vst.msk [vmem:[%s177 + $0x10] sm:$0xf] %vm2125, %v2097
        %2131 = vst.msk [vmem:[%s177 + $0x14] sm:$0xf] %vm2125, %v2098
        %2132 = vst.msk [vmem:[%s177 + $0x18] sm:$0xf] %vm2125, %v2099
        %2133 = vst.msk [vmem:[%s177 + $0x1c] sm:$0xf] %vm2125, %v2100
        %2134 = vst.msk [vmem:[%s177 + $0x20] sm:$0xf] %vm2125, %v2101
        %2135 = vst.msk [vmem:[%s177 + $0x24] sm:$0xf] %vm2125, %v2102
        %2136 = vst.msk [vmem:[%s177 + $0x28] sm:$0xf] %vm2125, %v2103
        %2137 = vst.msk [vmem:[%s177 + $0x2c] sm:$0xf] %vm2125, %v2104
        %2138 = vst.msk [vmem:[%s177 + $0x30] sm:$0xf] %vm2125, %v2105
        %2139 = vst.msk [vmem:[%s177 + $0x34] sm:$0xf] %vm2125, %v2106
        %2140 = vst.msk [vmem:[%s177 + $0x38] sm:$0xf] %vm2125, %v2107
        %2141 = vst.msk [vmem:[%s177 + $0x3c] sm:$0xf] %vm2125, %v2108
        %2142 = vst.msk [vmem:[%s177 + $0x40] sm:$0xf] %vm2125, %v2109
        %2143 = vst.msk [vmem:[%s177 + $0x44] sm:$0xf] %vm2125, %v2110
        %2144 = vst.msk [vmem:[%s177 + $0x48] sm:$0xf] %vm2125, %v2111
        %2145 = vst.msk [vmem:[%s177 + $0x4c] sm:$0xf] %vm2125, %v2112
        %2146 = vst.msk [vmem:[%s177 + $0x50] sm:$0xf] %vm2125, %v2113
        %2147 = vst.msk [vmem:[%s177 + $0x54] sm:$0xf] %vm2125, %v2114
        %2148 = vst.msk [vmem:[%s177 + $0x58] sm:$0xf] %vm2125, %v2115
        %2149 = vst.msk [vmem:[%s177 + $0x5c] sm:$0xf] %vm2125, %v2116
        %2150 = vst.msk [vmem:[%s177 + $0x60] sm:$0xf] %vm2125, %v2117
        %2151 = vst.msk [vmem:[%s177 + $0x64] sm:$0xf] %vm2125, %v2118
        %2152 = vst.msk [vmem:[%s177 + $0x68] sm:$0xf] %vm2125, %v2119
        %2153 = vst.msk [vmem:[%s177 + $0x6c] sm:$0xf] %vm2125, %v2120
        %2154 = vst.msk [vmem:[%s177 + $0x70] sm:$0xf] %vm2125, %v2121
        %2155 = vst.msk [vmem:[%s177 + $0x74] sm:$0xf] %vm2125, %v2122
        %2156 = vst.msk [vmem:[%s177 + $0x78] sm:$0xf] %vm2125, %v2123
        %2157 = vst.msk [vmem:[%s177 + $0x7c] sm:$0xf] %vm2125, %v2124
        %s2158 = sand.u32 %s107, 1
        %s2159 = scalar_lea.sflag [#allocation3], %s2158
        %s2160 = sand.u32 %s107, 1
        %s2161 = smul.addr %s2160, 128
        %s2162 = scalar_lea.vmem [#allocation2], %s2161
        // Predicated region
        $region33: #{tpu_custom_call.1} parent=31 // pred_check
          %p2163 = pneg %p117
        $region34: #{tpu_custom_call.1} parent=31 // pred_check_branch
          %2165 = sbr.rel (%p2163) target = $region36
        $region35: #{tpu_custom_call.1} parent=31 // pred_region
          %s2166 = smul.u32 16, %s22
          %2168 = vsyncadd %s2159, 0
          %s2169 = smul.addr %s2166, 2
          %s2170 = smul.addr %s21, 32
          %s2171 = sadd.s32 %s2169, %s2170
          %s2172 = smul.addr %s2171, 4
          %s2173 = scalar_lea.hbm %s3, %s2172
          %s2174 = sshll.u32 %s2162, 4
          %s2175 = int_to_ptr.vmem [resolvable:$true] %s2174
          %s2176 = sshll.u32 %s2173, 4
          %s2177 = int_to_ptr.hbm [resolvable:$true] %s2176
          %2182 = dma.vmem_to_hbm [thread:$0]  %s2175, 2048, %s2177, %s2159, 64, 64, 4
        $region36: #{tpu_custom_call.1} parent=31 // pred_fallthru
          _
      $region32: #{tpu_custom_call.1} parent=5 // pred_fallthru
        _
      %p2183 = scmp.le.s32.totalorder 2, %s12
      // Predicated region
      $region37: #{tpu_custom_call.1} parent=5 // pred_check
        %p2184 = pneg %p2183
      $region38: #{tpu_custom_call.1} parent=5 // pred_check_branch
        %2186 = sbr.rel (%p2184) target = $region40
      $region39: #{tpu_custom_call.1} parent=5 // pred_region
        %s2187 = ssub.s32 %s12, 2
        // Predicated region
        $region41: #{tpu_custom_call.1} parent=39 // pred_check
          %p2188 = pneg %p123
        $region42: #{tpu_custom_call.1} parent=39 // pred_check_branch
          %2190 = sbr.rel (%p2188) target = $region44
        $region43: #{tpu_custom_call.1} parent=39 // pred_region
          %s2191 = sand.u32 %s108, 1
          %s2192 = scalar_lea.sflag [#allocation3], %s2191
          %s2193 = sand.u32 %s108, 1
          %s2194 = smul.addr %s2193, 128
          %s2195 = scalar_lea.vmem [#allocation2], %s2194
          %2197 = dma.done %s2192, 2048
        $region44: #{tpu_custom_call.1} parent=39 // pred_fallthru
          _
      $region40: #{tpu_custom_call.1} parent=5 // pred_fallthru
        _
    $region6: #{tpu_custom_call.1} parent=1 // loop_footer
      %s16 = sadd.s32 1, %s12
    $region7: #{tpu_custom_call.1} parent=1 // loop_footer_branch
      %11 = sbr.rel target = $region3
    $region8: #{tpu_custom_call.1} parent=1 // loop_exit
      _
    %2198 = vsyncpa [#allocation3], 1
    %s2199 = scalar_lea.sflag [#allocation3], 1
    %2200 = vsyncpa %s2199, 1

</llo_original>
